<compile_context>
chip_gen: v7x
topology: tpu7x:2x2x1
jax: 0.10.0
libtpu: 0.0.40
codegen_flags: <defaults>
</compile_context>

<pallas_src>
import jax
import jax.numpy as jnp
from jax.experimental import pallas as pl
from jax.experimental.pallas import tpu as pltpu

IN_FEATURES = 28 * 28
HIDDENS = [128, 92, 64, 32]
OUTPUT = 10
LANE = 128                      # padded lane width for every hidden / output dim
N_LAYERS = 5


def _round_up(x, m):
    return (x + m - 1) // m * m


def _cdiv(a, b):
    return (a + b - 1) // b


def _mlp_kernel(x_ref,
                w1_ref, b1_ref, w2_ref, b2_ref, w3_ref, b3_ref,
                w4_ref, b4_ref, w5_ref, b5_ref,
                o_ref):
    layers = ((w1_ref, b1_ref), (w2_ref, b2_ref), (w3_ref, b3_ref),
              (w4_ref, b4_ref), (w5_ref, b5_ref))
    h = x_ref[...]                                    # bf16 (tm, 784) tile
    for i, (w_ref, b_ref) in enumerate(layers):
        # bf16 operands -> MXU; f32 accumulation; bias add + sigmoid in f32.
        acc = jnp.dot(h, w_ref[...],
                      preferred_element_type=jnp.float32) + b_ref[...]
        if i < N_LAYERS - 1:
            h = jax.nn.sigmoid(acc).astype(jnp.bfloat16)   # EUP, then bf16 for next MXU
        else:
            o_ref[...] = acc.astype(jnp.bfloat16)          # (tm, 128) unmasked store


def net_forward(x, params, *, tm_max=2048):
    """x: (B, 1, 28, 28) or (B, 28, 28) float32. Returns (B, 10) float32.

    params: list of (W_t (in, out) f32, b (1, out) f32) for the 5 layers
            (weights pre-transposed relative to torch.nn.Linear).
    tm_max: max batch tile (rows).  Actual tile is derived so the grid has at
            least 2 steps (both v7x TensorCores active) and batch padding is
            bounded to <16 rows.
    """
    b = x.shape[0]
    # x.view(-1, 28*28); stream as bf16 -- first matmul rounds operands to bf16
    # anyway, and this halves the dominant HBM traffic.
    x2d = x.reshape(b, IN_FEATURES).astype(jnp.bfloat16)

    # Tile selection: >=2 grid steps, tile a multiple of 16 (bf16 sublane pack),
    # padding bounded to one tile's rounding (< 16 * n_tiles rows, tiny).
    n_tiles = max(2, _cdiv(b, tm_max))
    tm = _round_up(_cdiv(b, n_tiles), 16)
    b_pad = tm * n_tiles
    if b_pad != b:
        x2d = jnp.pad(x2d, ((0, b_pad - b), (0, 0)))

    # Pack weights: bf16, every hidden/output dim zero-padded to 128 lanes.
    # Zero rows/cols contribute exactly 0 to the accumulation, so numerics are
    # unchanged; every inter-layer tile is lane-dense.
    pad_dims = [IN_FEATURES] + [LANE] * N_LAYERS
    flat = []
    in_specs = [pl.BlockSpec((tm, IN_FEATURES), lambda i: (i, 0))]
    for li, (w_t, bias) in enumerate(params):
        in_d, out_d = w_t.shape
        in_p, out_p = pad_dims[li], pad_dims[li + 1]
        w_bf = jnp.pad(w_t.astype(jnp.bfloat16),
                       ((0, in_p - in_d), (0, out_p - out_d)))
        b_f32 = jnp.pad(bias.astype(jnp.float32), ((0, 0), (0, out_p - out_d)))
        flat.extend([w_bf, b_f32])
        in_specs.append(pl.BlockSpec(w_bf.shape, lambda i: (0, 0)))   # resident
        in_specs.append(pl.BlockSpec(b_f32.shape, lambda i: (0, 0)))  # resident

    # Cost estimate (bf16 x and output, bf16 weights, f32 biases).
    macs = sum(pad_dims[i] * pad_dims[i + 1] for i in range(N_LAYERS))
    weight_bytes = 2 * macs + 4 * sum(pad_dims[1:])
    cost = pl.CostEstimate(
        flops=2 * b_pad * macs,
        transcendentals=b_pad * (N_LAYERS - 1) * LANE,
        bytes_accessed=b_pad * (IN_FEATURES * 2 + LANE * 2) + weight_bytes,
    )

    out = pl.pallas_call(
        _mlp_kernel,
        out_shape=jax.ShapeDtypeStruct((b_pad, LANE), jnp.bfloat16),
        grid=(n_tiles,),
        in_specs=in_specs,
        out_specs=pl.BlockSpec((tm, LANE), lambda i: (i, 0)),
        compiler_params=pltpu.CompilerParams(
            dimension_semantics=("parallel",)),
        cost_estimate=cost,
    )(x2d, *flat)
    # Slice off batch/lane padding; return f32 logits like the torch module.
    return out[:b, :OUTPUT].astype(jnp.float32)


def init_params(key):
    """Deterministic init mirroring torch.nn.Linear shapes (weights pre-transposed)."""
    dims = [IN_FEATURES] + HIDDENS + [OUTPUT]
    params = []
    for i in range(len(dims) - 1):
        fan_in, fan_out = dims[i], dims[i + 1]
        key, kw, kb = jax.random.split(key, 3)
        bound = 1.0 / (fan_in ** 0.5)
        w_t = jax.random.uniform(kw, (fan_in, fan_out), jnp.float32, -bound, bound)
        bias = jax.random.uniform(kb, (1, fan_out), jnp.float32, -bound, bound)
        params.append((w_t, bias))
    return params


def reference_forward(x, params):
    """Pure-JAX reference mirroring the kernel numerics:
    bf16 matmul operands, f32 accumulation + bias + sigmoid, bf16 output."""
    b = x.shape[0]
    h = x.reshape(b, IN_FEATURES).astype(jnp.bfloat16)
    out = None
    for i, (w_t, bias) in enumerate(params):
        acc = jnp.dot(h, w_t.astype(jnp.bfloat16),
                      preferred_element_type=jnp.float32) + bias
        if i < len(params) - 1:
            h = jax.nn.sigmoid(acc).astype(jnp.bfloat16)
        else:
            out = acc.astype(jnp.bfloat16).astype(jnp.float32)
    return out


if __name__ == "__main__":
    key = jax.random.PRNGKey(0)
    kx, kp = jax.random.split(key)
    batch = 30                              # not a multiple of the tile -> exercises padding
    x = jax.random.normal(kx, (batch, 1, 28, 28), jnp.float32)
    params = init_params(kp)

    out = net_forward(x, params)            # n_tiles=2, tm=16 -> 2 grid steps
    out = jax.block_until_ready(out)

    ref = reference_forward(x, params)
    assert out.shape == (batch, OUTPUT)
    assert jnp.allclose(out, ref, atol=2e-2, rtol=2e-2), "mismatch vs reference"

    print("KERNEL_OK")
</pallas_src>

<mosaic_0001>
module attributes {stable_mosaic.version = 11 : i64} {
  func.func @_mlp_kernel(%arg0: i32, %arg1: memref<16x784xbf16, #tpu.memory_space<vmem>>, %arg2: memref<784x128xbf16, #tpu.memory_space<vmem>>, %arg3: memref<1x128xf32, #tpu.memory_space<vmem>>, %arg4: memref<128x128xbf16, #tpu.memory_space<vmem>>, %arg5: memref<1x128xf32, #tpu.memory_space<vmem>>, %arg6: memref<128x128xbf16, #tpu.memory_space<vmem>>, %arg7: memref<1x128xf32, #tpu.memory_space<vmem>>, %arg8: memref<128x128xbf16, #tpu.memory_space<vmem>>, %arg9: memref<1x128xf32, #tpu.memory_space<vmem>>, %arg10: memref<128x128xbf16, #tpu.memory_space<vmem>>, %arg11: memref<1x128xf32, #tpu.memory_space<vmem>>, %arg12: memref<16x128xbf16, #tpu.memory_space<vmem>>) attributes {dimension_semantics = [#tpu.dimension_semantics<parallel>], iteration_bounds = array<i64: 2>, scalar_prefetch = 0 : i64, scratch_operands = 0 : i64, tpu.core_type = #tpu.core_type<tc>, window_params = [{transform_indices = @transform_0, window_bounds = array<i64: 16, 784>}, {pipeline_mode = #tpu.pipeline_mode<synchronous>, transform_indices = @transform_1, window_bounds = array<i64: 784, 128>}, {pipeline_mode = #tpu.pipeline_mode<synchronous>, transform_indices = @transform_2, window_bounds = array<i64: 1, 128>}, {pipeline_mode = #tpu.pipeline_mode<synchronous>, transform_indices = @transform_3, window_bounds = array<i64: 128, 128>}, {pipeline_mode = #tpu.pipeline_mode<synchronous>, transform_indices = @transform_4, window_bounds = array<i64: 1, 128>}, {pipeline_mode = #tpu.pipeline_mode<synchronous>, transform_indices = @transform_5, window_bounds = array<i64: 128, 128>}, {pipeline_mode = #tpu.pipeline_mode<synchronous>, transform_indices = @transform_6, window_bounds = array<i64: 1, 128>}, {pipeline_mode = #tpu.pipeline_mode<synchronous>, transform_indices = @transform_7, window_bounds = array<i64: 128, 128>}, {pipeline_mode = #tpu.pipeline_mode<synchronous>, transform_indices = @transform_8, window_bounds = array<i64: 1, 128>}, {pipeline_mode = #tpu.pipeline_mode<synchronous>, transform_indices = @transform_9, window_bounds = array<i64: 128, 128>}, {pipeline_mode = #tpu.pipeline_mode<synchronous>, transform_indices = @transform_10, window_bounds = array<i64: 1, 128>}, {transform_indices = @transform_11, window_bounds = array<i64: 16, 128>}]} {
    %c0 = arith.constant 0 : index
    %c0_0 = arith.constant 0 : index
    %0 = vector.load %arg1[%c0, %c0_0] : memref<16x784xbf16, #tpu.memory_space<vmem>>, vector<16x784xbf16>
    %c0_1 = arith.constant 0 : index
    %c0_2 = arith.constant 0 : index
    %1 = vector.load %arg2[%c0_1, %c0_2] : memref<784x128xbf16, #tpu.memory_space<vmem>>, vector<784x128xbf16>
    %cst = arith.constant dense<0.000000e+00> : vector<16x128xf32>
    %2 = tpu.matmul %0, %1, %cst {dimension_numbers = #tpu.dot_dimension_numbers<[1], [0], [0], [1], [0, 0, 1, 1], [], []>} : vector<16x784xbf16>, vector<784x128xbf16>, vector<16x128xf32> -> vector<16x128xf32>
    %c0_3 = arith.constant 0 : index
    %c0_4 = arith.constant 0 : index
    %3 = vector.load %arg3[%c0_3, %c0_4] : memref<1x128xf32, #tpu.memory_space<vmem>>, vector<1x128xf32>
    %4 = vector.broadcast %3 : vector<1x128xf32> to vector<16x128xf32>
    %5 = arith.addf %2, %4 : vector<16x128xf32>
    %6 = arith.negf %5 : vector<16x128xf32>
    %7 = math.exp %6 : vector<16x128xf32>
    %cst_5 = arith.constant 1.000000e+00 : f32
    %8 = vector.broadcast %cst_5 : f32 to vector<16x128xf32>
    %9 = arith.addf %8, %7 : vector<16x128xf32>
    %10 = arith.divf %8, %9 : vector<16x128xf32>
    %11 = arith.truncf %10 : vector<16x128xf32> to vector<16x128xbf16>
    %c0_6 = arith.constant 0 : index
    %c0_7 = arith.constant 0 : index
    %12 = vector.load %arg4[%c0_6, %c0_7] : memref<128x128xbf16, #tpu.memory_space<vmem>>, vector<128x128xbf16>
    %cst_8 = arith.constant dense<0.000000e+00> : vector<16x128xf32>
    %13 = tpu.matmul %11, %12, %cst_8 {dimension_numbers = #tpu.dot_dimension_numbers<[1], [0], [0], [1], [0, 0, 1, 1], [], []>} : vector<16x128xbf16>, vector<128x128xbf16>, vector<16x128xf32> -> vector<16x128xf32>
    %c0_9 = arith.constant 0 : index
    %c0_10 = arith.constant 0 : index
    %14 = vector.load %arg5[%c0_9, %c0_10] : memref<1x128xf32, #tpu.memory_space<vmem>>, vector<1x128xf32>
    %15 = vector.broadcast %14 : vector<1x128xf32> to vector<16x128xf32>
    %16 = arith.addf %13, %15 : vector<16x128xf32>
    %17 = arith.negf %16 : vector<16x128xf32>
    %18 = math.exp %17 : vector<16x128xf32>
    %cst_11 = arith.constant 1.000000e+00 : f32
    %19 = vector.broadcast %cst_11 : f32 to vector<16x128xf32>
    %20 = arith.addf %19, %18 : vector<16x128xf32>
    %21 = arith.divf %19, %20 : vector<16x128xf32>
    %22 = arith.truncf %21 : vector<16x128xf32> to vector<16x128xbf16>
    %c0_12 = arith.constant 0 : index
    %c0_13 = arith.constant 0 : index
    %23 = vector.load %arg6[%c0_12, %c0_13] : memref<128x128xbf16, #tpu.memory_space<vmem>>, vector<128x128xbf16>
    %cst_14 = arith.constant dense<0.000000e+00> : vector<16x128xf32>
    %24 = tpu.matmul %22, %23, %cst_14 {dimension_numbers = #tpu.dot_dimension_numbers<[1], [0], [0], [1], [0, 0, 1, 1], [], []>} : vector<16x128xbf16>, vector<128x128xbf16>, vector<16x128xf32> -> vector<16x128xf32>
    %c0_15 = arith.constant 0 : index
    %c0_16 = arith.constant 0 : index
    %25 = vector.load %arg7[%c0_15, %c0_16] : memref<1x128xf32, #tpu.memory_space<vmem>>, vector<1x128xf32>
    %26 = vector.broadcast %25 : vector<1x128xf32> to vector<16x128xf32>
    %27 = arith.addf %24, %26 : vector<16x128xf32>
    %28 = arith.negf %27 : vector<16x128xf32>
    %29 = math.exp %28 : vector<16x128xf32>
    %cst_17 = arith.constant 1.000000e+00 : f32
    %30 = vector.broadcast %cst_17 : f32 to vector<16x128xf32>
    %31 = arith.addf %30, %29 : vector<16x128xf32>
    %32 = arith.divf %30, %31 : vector<16x128xf32>
    %33 = arith.truncf %32 : vector<16x128xf32> to vector<16x128xbf16>
    %c0_18 = arith.constant 0 : index
    %c0_19 = arith.constant 0 : index
    %34 = vector.load %arg8[%c0_18, %c0_19] : memref<128x128xbf16, #tpu.memory_space<vmem>>, vector<128x128xbf16>
    %cst_20 = arith.constant dense<0.000000e+00> : vector<16x128xf32>
    %35 = tpu.matmul %33, %34, %cst_20 {dimension_numbers = #tpu.dot_dimension_numbers<[1], [0], [0], [1], [0, 0, 1, 1], [], []>} : vector<16x128xbf16>, vector<128x128xbf16>, vector<16x128xf32> -> vector<16x128xf32>
    %c0_21 = arith.constant 0 : index
    %c0_22 = arith.constant 0 : index
    %36 = vector.load %arg9[%c0_21, %c0_22] : memref<1x128xf32, #tpu.memory_space<vmem>>, vector<1x128xf32>
    %37 = vector.broadcast %36 : vector<1x128xf32> to vector<16x128xf32>
    %38 = arith.addf %35, %37 : vector<16x128xf32>
    %39 = arith.negf %38 : vector<16x128xf32>
    %40 = math.exp %39 : vector<16x128xf32>
    %cst_23 = arith.constant 1.000000e+00 : f32
    %41 = vector.broadcast %cst_23 : f32 to vector<16x128xf32>
    %42 = arith.addf %41, %40 : vector<16x128xf32>
    %43 = arith.divf %41, %42 : vector<16x128xf32>
    %44 = arith.truncf %43 : vector<16x128xf32> to vector<16x128xbf16>
    %c0_24 = arith.constant 0 : index
    %c0_25 = arith.constant 0 : index
    %45 = vector.load %arg10[%c0_24, %c0_25] : memref<128x128xbf16, #tpu.memory_space<vmem>>, vector<128x128xbf16>
    %cst_26 = arith.constant dense<0.000000e+00> : vector<16x128xf32>
    %46 = tpu.matmul %44, %45, %cst_26 {dimension_numbers = #tpu.dot_dimension_numbers<[1], [0], [0], [1], [0, 0, 1, 1], [], []>} : vector<16x128xbf16>, vector<128x128xbf16>, vector<16x128xf32> -> vector<16x128xf32>
    %c0_27 = arith.constant 0 : index
    %c0_28 = arith.constant 0 : index
    %47 = vector.load %arg11[%c0_27, %c0_28] : memref<1x128xf32, #tpu.memory_space<vmem>>, vector<1x128xf32>
    %48 = vector.broadcast %47 : vector<1x128xf32> to vector<16x128xf32>
    %49 = arith.addf %46, %48 : vector<16x128xf32>
    %50 = arith.truncf %49 : vector<16x128xf32> to vector<16x128xbf16>
    %c0_29 = arith.constant 0 : index
    %c0_30 = arith.constant 0 : index
    %51 = vector.load %arg12[%c0_29, %c0_30] : memref<16x128xbf16, #tpu.memory_space<vmem>>, vector<16x128xbf16>
    tpu.vector_store %arg12[%c0_29, %c0_30], %50 {strides = array<i32>} : memref<16x128xbf16, #tpu.memory_space<vmem>>, vector<16x128xbf16>,
    return
  }
  func.func @transform_0(%arg0: i32) -> (i32, i32) {
    %c0_i32 = arith.constant 0 : i32
    %c0_i32_0 = arith.constant 0 : i32
    return %arg0, %c0_i32 : i32, i32
  }
  func.func @transform_1(%arg0: i32) -> (i32, i32) {
    %c0_i32 = arith.constant 0 : i32
    %c0_i32_0 = arith.constant 0 : i32
    %c0_i32_1 = arith.constant 0 : i32
    return %c0_i32, %c0_i32_0 : i32, i32
  }
  func.func @transform_2(%arg0: i32) -> (i32, i32) {
    %c0_i32 = arith.constant 0 : i32
    %c0_i32_0 = arith.constant 0 : i32
    %c0_i32_1 = arith.constant 0 : i32
    return %c0_i32, %c0_i32_0 : i32, i32
  }
  func.func @transform_3(%arg0: i32) -> (i32, i32) {
    %c0_i32 = arith.constant 0 : i32
    %c0_i32_0 = arith.constant 0 : i32
    %c0_i32_1 = arith.constant 0 : i32
    return %c0_i32, %c0_i32_0 : i32, i32
  }
  func.func @transform_4(%arg0: i32) -> (i32, i32) {
    %c0_i32 = arith.constant 0 : i32
    %c0_i32_0 = arith.constant 0 : i32
    %c0_i32_1 = arith.constant 0 : i32
    return %c0_i32, %c0_i32_0 : i32, i32
  }
  func.func @transform_5(%arg0: i32) -> (i32, i32) {
    %c0_i32 = arith.constant 0 : i32
    %c0_i32_0 = arith.constant 0 : i32
    %c0_i32_1 = arith.constant 0 : i32
    return %c0_i32, %c0_i32_0 : i32, i32
  }
  func.func @transform_6(%arg0: i32) -> (i32, i32) {
    %c0_i32 = arith.constant 0 : i32
    %c0_i32_0 = arith.constant 0 : i32
    %c0_i32_1 = arith.constant 0 : i32
    return %c0_i32, %c0_i32_0 : i32, i32
  }
  func.func @transform_7(%arg0: i32) -> (i32, i32) {
    %c0_i32 = arith.constant 0 : i32
    %c0_i32_0 = arith.constant 0 : i32
    %c0_i32_1 = arith.constant 0 : i32
    return %c0_i32, %c0_i32_0 : i32, i32
  }
  func.func @transform_8(%arg0: i32) -> (i32, i32) {
    %c0_i32 = arith.constant 0 : i32
    %c0_i32_0 = arith.constant 0 : i32
    %c0_i32_1 = arith.constant 0 : i32
    return %c0_i32, %c0_i32_0 : i32, i32
  }
  func.func @transform_9(%arg0: i32) -> (i32, i32) {
    %c0_i32 = arith.constant 0 : i32
    %c0_i32_0 = arith.constant 0 : i32
    %c0_i32_1 = arith.constant 0 : i32
    return %c0_i32, %c0_i32_0 : i32, i32
  }
  func.func @transform_10(%arg0: i32) -> (i32, i32) {
    %c0_i32 = arith.constant 0 : i32
    %c0_i32_0 = arith.constant 0 : i32
    %c0_i32_1 = arith.constant 0 : i32
    return %c0_i32, %c0_i32_0 : i32, i32
  }
  func.func @transform_11(%arg0: i32) -> (i32, i32) {
    %c0_i32 = arith.constant 0 : i32
    %c0_i32_0 = arith.constant 0 : i32
    return %arg0, %c0_i32 : i32, i32
  }
}

</mosaic_0001>

<llo_original>
// kernel: tpu_custom_call.1
$region0: #{tpu_custom_call.1}
  #allocation0 [shape = 'u32[]', space=smem, size = 0x4, offset = 0x4, fixed_abs, tag = 'smem constant byte address 0x4 - core index']
  #allocation1 [shape = 'u32[144,128]{1,0:T(1,128)}', space=vmem, size = 0x12000, scoped, tag = 'internal scratch']
  %s0 = inlined_call_operand.hbm [shape: bf16[32,784], index: 0, kind: input, shape index: {}]
  %s1 = inlined_call_operand.hbm [shape: bf16[784,128], index: 1, kind: input, shape index: {}]
  %s2 = inlined_call_operand.vmem [shape: f32[1,128], index: 2, kind: input, shape index: {}]
  %s3 = inlined_call_operand.hbm [shape: bf16[128,128], index: 3, kind: input, shape index: {}]
  %s4 = inlined_call_operand.vmem [shape: f32[1,128], index: 4, kind: input, shape index: {}]
  %s5 = inlined_call_operand.hbm [shape: bf16[128,128], index: 5, kind: input, shape index: {}]
  %s6 = inlined_call_operand.vmem [shape: f32[1,128], index: 6, kind: input, shape index: {}]
  %s7 = inlined_call_operand.hbm [shape: bf16[128,128], index: 7, kind: input, shape index: {}]
  %s8 = inlined_call_operand.vmem [shape: f32[1,128], index: 8, kind: input, shape index: {}]
  %s9 = inlined_call_operand.hbm [shape: bf16[128,128], index: 9, kind: input, shape index: {}]
  %s10 = inlined_call_operand.vmem [shape: f32[1,128], index: 10, kind: input, shape index: {}]
  %s11 = inlined_call_operand.hbm [shape: bf16[32,128], index: 11, kind: output, shape index: {}]
  %s12 = sld [smem:[#allocation0]]
  $region101: #{tpu_custom_call.1} parent=0
    _
  %s14 = ssub.s32 1, %s12
  %s15 = scalar_select 0, %s14, %s12
  $region1: #{tpu_custom_call.1} parent=0
    #allocation2 [shape = 'u8[57344]{0}', space=vmem, size = 0xe000, scoped, tag = 'input window, operand 0']
    #allocation3 [shape = 's32[2]{0}', space=sflag, size = 0x8, scoped, tag = 'scoped memory for tpu_custom_call.1']
    #allocation4 [shape = 's32[2]{0}', space=sflag, size = 0x8, scoped, tag = 'scoped memory for tpu_custom_call.1']
    #allocation5 [shape = 'u8[200704]{0}', space=vmem, size = 0x31000, scoped, tag = 'input window, operand 1, single buffered']
    #allocation6 [shape = 's32[1]{0}', space=sflag, size = 0x4, scoped, tag = 'scoped memory for tpu_custom_call.1']
    #allocation7 [shape = 'u8[32768]{0}', space=vmem, size = 0x8000, scoped, tag = 'input window, operand 3, single buffered']
    #allocation8 [shape = 'u8[32768]{0}', space=vmem, size = 0x8000, scoped, tag = 'input window, operand 5, single buffered']
    #allocation9 [shape = 's32[1]{0}', space=sflag, size = 0x4, scoped, tag = 'scoped memory for tpu_custom_call.1']
    #allocation10 [shape = 'u8[32768]{0}', space=vmem, size = 0x8000, scoped, tag = 'input window, operand 7, single buffered']
    #allocation11 [shape = 'u8[32768]{0}', space=vmem, size = 0x8000, scoped, tag = 'input window, operand 9, single buffered']
    #allocation12 [shape = 's32[1]{0}', space=sflag, size = 0x4, scoped, tag = 'scoped memory for tpu_custom_call.1']
    #allocation13 [shape = 'u8[8192]{0}', space=vmem, size = 0x2000, scoped, tag = 'output window, operand 0']
    %16 = vsyncpa [#allocation3], 0
    %s17 = scalar_lea.sflag [#allocation3], 1
    %18 = vsyncpa %s17, 0
    %19 = vsyncpa [#allocation6], 0
    %20 = vsyncpa [#allocation9], 0
    %21 = vsyncpa [#allocation12], 0
    %22 = vsyncpa [#allocation4], 0
    %s23 = scalar_lea.sflag [#allocation4], 1
    %24 = vsyncpa %s23, 0
    loop: start=0, step=1, limit=4
    $region2: #{tpu_custom_call.1} parent=1 // loop_pre_header
      _
    $region3: #{tpu_custom_call.1} parent=1 // loop_header
      %s26 = sphi 0, %s30
      %p27 = scmp.ge.s32.totalorder %s26, 4
      %s36 = sphi 0, %s38
      %s39 = sphi 0, %s36
      %s40 = sphi 0, %s39
      %s56 = sphi 0, %s40
      %s60 = sphi 0, %s60
      %s62 = sphi 0, %s60
      %s63 = sphi 0, %s62
      %s77 = sphi 0, %s63
      %s81 = sphi 0, %s81
      %s83 = sphi 0, %s81
      %s84 = sphi 0, %s83
      %s98 = sphi 0, %s84
      %s102 = sphi 0, %s102
      %s104 = sphi 0, %s102
      %s105 = sphi 0, %s104
      %s119 = sphi 0, %s105
      %s123 = sphi 0, %s123
      %s125 = sphi 0, %s123
      %s126 = sphi 0, %s125
      %s140 = sphi 0, %s126
      %s144 = sphi 0, %s144
      %s146 = sphi 0, %s144
      %s147 = sphi 0, %s146
      %s161 = sphi 0, %s147
      %s165 = sphi 0, %s165
      %s167 = sphi 0, %s165
      %s168 = sphi 0, %s167
      %s182 = sphi 0, %s168
      %s186 = sphi 0, %s186
      %s188 = sphi 0, %s186
      %s189 = sphi 0, %s188
      %s203 = sphi 0, %s189
      %s207 = sphi 0, %s207
      %s209 = sphi 0, %s207
      %s210 = sphi 0, %s209
      %s224 = sphi 0, %s210
      %s228 = sphi 0, %s228
      %s230 = sphi 0, %s228
      %s231 = sphi 0, %s230
      %s245 = sphi 0, %s231
      %s249 = sphi 0, %s249
      %s251 = sphi 0, %s249
      %s252 = sphi 0, %s251
      %s266 = sphi 0, %s252
      %s272 = sphi 0, %s274
      %s275 = sphi 0, %s272
      %s276 = sphi 0, %s275
      %s292 = sphi 0, %s276
    $region4: #{tpu_custom_call.1} parent=1 // loop_header_branch
      %29 = sbr.rel (%p27) target = $region8
    $region5: #{tpu_custom_call.1} parent=1 // loop_body
      %s31 = ssub.s32 %s26, 1
      %s32 = ssub.s32 %s26, 2
      %s33 = sadd.s32 %s26, 1
      %s34 = ssub.s32 %s26, %s33
      %p35 = scmp.eq.s32.totalorder %s34, 0
      %s37 = sadd.s32 %s36, 1
      %s38 = scalar_select %p35, %s36, %s37
      %p41 = pneg %p35
      %p42 = scmp.eq.s32.totalorder %s26, 1
      %p43 = por %p41, %p42
      %p44 = scmp.ne.s32.totalorder %s36, %s39
      %p45 = scmp.eq.s32.totalorder %s26, 0
      %p46 = por %p44, %p45
      %p47 = scmp.ne.s32.totalorder %s36, %s39
      %p48 = scmp.eq.s32.totalorder %s31, 1
      %p49 = por %p47, %p48
      %p50 = scmp.ne.s32.totalorder %s39, %s40
      %p51 = scmp.eq.s32.totalorder %s31, 0
      %p52 = por %p50, %p51
      %p53 = scmp.ne.s32.totalorder %s39, %s40
      %p54 = scmp.eq.s32.totalorder %s32, 1
      %p55 = por %p53, %p54
      %p57 = scmp.ne.s32.totalorder %s40, %s56
      %p58 = scmp.eq.s32.totalorder %s32, 0
      %p59 = por %p57, %p58
      %s61 = sadd.s32 %s60, 1
      %p64 = scmp.eq.s32.totalorder %s26, 1
      %p65 = scmp.ne.s32.totalorder %s60, %s62
      %p66 = scmp.eq.s32.totalorder %s26, 0
      %p67 = por %p65, %p66
      %p68 = scmp.ne.s32.totalorder %s60, %s62
      %p69 = scmp.eq.s32.totalorder %s31, 1
      %p70 = por %p68, %p69
      %p71 = scmp.ne.s32.totalorder %s62, %s63
      %p72 = scmp.eq.s32.totalorder %s31, 0
      %p73 = por %p71, %p72
      %p74 = scmp.ne.s32.totalorder %s62, %s63
      %p75 = scmp.eq.s32.totalorder %s32, 1
      %p76 = por %p74, %p75
      %p78 = scmp.ne.s32.totalorder %s63, %s77
      %p79 = scmp.eq.s32.totalorder %s32, 0
      %p80 = por %p78, %p79
      %s82 = sadd.s32 %s81, 1
      %p85 = scmp.eq.s32.totalorder %s26, 1
      %p86 = scmp.ne.s32.totalorder %s81, %s83
      %p87 = scmp.eq.s32.totalorder %s26, 0
      %p88 = por %p86, %p87
      %p89 = scmp.ne.s32.totalorder %s81, %s83
      %p90 = scmp.eq.s32.totalorder %s31, 1
      %p91 = por %p89, %p90
      %p92 = scmp.ne.s32.totalorder %s83, %s84
      %p93 = scmp.eq.s32.totalorder %s31, 0
      %p94 = por %p92, %p93
      %p95 = scmp.ne.s32.totalorder %s83, %s84
      %p96 = scmp.eq.s32.totalorder %s32, 1
      %p97 = por %p95, %p96
      %p99 = scmp.ne.s32.totalorder %s84, %s98
      %p100 = scmp.eq.s32.totalorder %s32, 0
      %p101 = por %p99, %p100
      %s103 = sadd.s32 %s102, 1
      %p106 = scmp.eq.s32.totalorder %s26, 1
      %p107 = scmp.ne.s32.totalorder %s102, %s104
      %p108 = scmp.eq.s32.totalorder %s26, 0
      %p109 = por %p107, %p108
      %p110 = scmp.ne.s32.totalorder %s102, %s104
      %p111 = scmp.eq.s32.totalorder %s31, 1
      %p112 = por %p110, %p111
      %p113 = scmp.ne.s32.totalorder %s104, %s105
      %p114 = scmp.eq.s32.totalorder %s31, 0
      %p115 = por %p113, %p114
      %p116 = scmp.ne.s32.totalorder %s104, %s105
      %p117 = scmp.eq.s32.totalorder %s32, 1
      %p118 = por %p116, %p117
      %p120 = scmp.ne.s32.totalorder %s105, %s119
      %p121 = scmp.eq.s32.totalorder %s32, 0
      %p122 = por %p120, %p121
      %s124 = sadd.s32 %s123, 1
      %p127 = scmp.eq.s32.totalorder %s26, 1
      %p128 = scmp.ne.s32.totalorder %s123, %s125
      %p129 = scmp.eq.s32.totalorder %s26, 0
      %p130 = por %p128, %p129
      %p131 = scmp.ne.s32.totalorder %s123, %s125
      %p132 = scmp.eq.s32.totalorder %s31, 1
      %p133 = por %p131, %p132
      %p134 = scmp.ne.s32.totalorder %s125, %s126
      %p135 = scmp.eq.s32.totalorder %s31, 0
      %p136 = por %p134, %p135
      %p137 = scmp.ne.s32.totalorder %s125, %s126
      %p138 = scmp.eq.s32.totalorder %s32, 1
      %p139 = por %p137, %p138
      %p141 = scmp.ne.s32.totalorder %s126, %s140
      %p142 = scmp.eq.s32.totalorder %s32, 0
      %p143 = por %p141, %p142
      %s145 = sadd.s32 %s144, 1
      %p148 = scmp.eq.s32.totalorder %s26, 1
      %p149 = scmp.ne.s32.totalorder %s144, %s146
      %p150 = scmp.eq.s32.totalorder %s26, 0
      %p151 = por %p149, %p150
      %p152 = scmp.ne.s32.totalorder %s144, %s146
      %p153 = scmp.eq.s32.totalorder %s31, 1
      %p154 = por %p152, %p153
      %p155 = scmp.ne.s32.totalorder %s146, %s147
      %p156 = scmp.eq.s32.totalorder %s31, 0
      %p157 = por %p155, %p156
      %p158 = scmp.ne.s32.totalorder %s146, %s147
      %p159 = scmp.eq.s32.totalorder %s32, 1
      %p160 = por %p158, %p159
      %p162 = scmp.ne.s32.totalorder %s147, %s161
      %p163 = scmp.eq.s32.totalorder %s32, 0
      %p164 = por %p162, %p163
      %s166 = sadd.s32 %s165, 1
      %p169 = scmp.eq.s32.totalorder %s26, 1
      %p170 = scmp.ne.s32.totalorder %s165, %s167
      %p171 = scmp.eq.s32.totalorder %s26, 0
      %p172 = por %p170, %p171
      %p173 = scmp.ne.s32.totalorder %s165, %s167
      %p174 = scmp.eq.s32.totalorder %s31, 1
      %p175 = por %p173, %p174
      %p176 = scmp.ne.s32.totalorder %s167, %s168
      %p177 = scmp.eq.s32.totalorder %s31, 0
      %p178 = por %p176, %p177
      %p179 = scmp.ne.s32.totalorder %s167, %s168
      %p180 = scmp.eq.s32.totalorder %s32, 1
      %p181 = por %p179, %p180
      %p183 = scmp.ne.s32.totalorder %s168, %s182
      %p184 = scmp.eq.s32.totalorder %s32, 0
      %p185 = por %p183, %p184
      %s187 = sadd.s32 %s186, 1
      %p190 = scmp.eq.s32.totalorder %s26, 1
      %p191 = scmp.ne.s32.totalorder %s186, %s188
      %p192 = scmp.eq.s32.totalorder %s26, 0
      %p193 = por %p191, %p192
      %p194 = scmp.ne.s32.totalorder %s186, %s188
      %p195 = scmp.eq.s32.totalorder %s31, 1
      %p196 = por %p194, %p195
      %p197 = scmp.ne.s32.totalorder %s188, %s189
      %p198 = scmp.eq.s32.totalorder %s31, 0
      %p199 = por %p197, %p198
      %p200 = scmp.ne.s32.totalorder %s188, %s189
      %p201 = scmp.eq.s32.totalorder %s32, 1
      %p202 = por %p200, %p201
      %p204 = scmp.ne.s32.totalorder %s189, %s203
      %p205 = scmp.eq.s32.totalorder %s32, 0
      %p206 = por %p204, %p205
      %s208 = sadd.s32 %s207, 1
      %p211 = scmp.eq.s32.totalorder %s26, 1
      %p212 = scmp.ne.s32.totalorder %s207, %s209
      %p213 = scmp.eq.s32.totalorder %s26, 0
      %p214 = por %p212, %p213
      %p215 = scmp.ne.s32.totalorder %s207, %s209
      %p216 = scmp.eq.s32.totalorder %s31, 1
      %p217 = por %p215, %p216
      %p218 = scmp.ne.s32.totalorder %s209, %s210
      %p219 = scmp.eq.s32.totalorder %s31, 0
      %p220 = por %p218, %p219
      %p221 = scmp.ne.s32.totalorder %s209, %s210
      %p222 = scmp.eq.s32.totalorder %s32, 1
      %p223 = por %p221, %p222
      %p225 = scmp.ne.s32.totalorder %s210, %s224
      %p226 = scmp.eq.s32.totalorder %s32, 0
      %p227 = por %p225, %p226
      %s229 = sadd.s32 %s228, 1
      %p232 = scmp.eq.s32.totalorder %s26, 1
      %p233 = scmp.ne.s32.totalorder %s228, %s230
      %p234 = scmp.eq.s32.totalorder %s26, 0
      %p235 = por %p233, %p234
      %p236 = scmp.ne.s32.totalorder %s228, %s230
      %p237 = scmp.eq.s32.totalorder %s31, 1
      %p238 = por %p236, %p237
      %p239 = scmp.ne.s32.totalorder %s230, %s231
      %p240 = scmp.eq.s32.totalorder %s31, 0
      %p241 = por %p239, %p240
      %p242 = scmp.ne.s32.totalorder %s230, %s231
      %p243 = scmp.eq.s32.totalorder %s32, 1
      %p244 = por %p242, %p243
      %p246 = scmp.ne.s32.totalorder %s231, %s245
      %p247 = scmp.eq.s32.totalorder %s32, 0
      %p248 = por %p246, %p247
      %s250 = sadd.s32 %s249, 1
      %p253 = scmp.eq.s32.totalorder %s26, 1
      %p254 = scmp.ne.s32.totalorder %s249, %s251
      %p255 = scmp.eq.s32.totalorder %s26, 0
      %p256 = por %p254, %p255
      %p257 = scmp.ne.s32.totalorder %s249, %s251
      %p258 = scmp.eq.s32.totalorder %s31, 1
      %p259 = por %p257, %p258
      %p260 = scmp.ne.s32.totalorder %s251, %s252
      %p261 = scmp.eq.s32.totalorder %s31, 0
      %p262 = por %p260, %p261
      %p263 = scmp.ne.s32.totalorder %s251, %s252
      %p264 = scmp.eq.s32.totalorder %s32, 1
      %p265 = por %p263, %p264
      %p267 = scmp.ne.s32.totalorder %s252, %s266
      %p268 = scmp.eq.s32.totalorder %s32, 0
      %p269 = por %p267, %p268
      %s270 = ssub.s32 %s26, %s33
      %p271 = scmp.eq.s32.totalorder %s270, 0
      %s273 = sadd.s32 %s272, 1
      %s274 = scalar_select %p271, %s272, %s273
      %p277 = pneg %p271
      %p278 = scmp.eq.s32.totalorder %s26, 1
      %p279 = por %p277, %p278
      %p280 = scmp.ne.s32.totalorder %s272, %s275
      %p281 = scmp.eq.s32.totalorder %s26, 0
      %p282 = por %p280, %p281
      %p283 = scmp.ne.s32.totalorder %s272, %s275
      %p284 = scmp.eq.s32.totalorder %s31, 1
      %p285 = por %p283, %p284
      %p286 = scmp.ne.s32.totalorder %s275, %s276
      %p287 = scmp.eq.s32.totalorder %s31, 0
      %p288 = por %p286, %p287
      %p289 = scmp.ne.s32.totalorder %s275, %s276
      %p290 = scmp.eq.s32.totalorder %s32, 1
      %p291 = por %p289, %p290
      %p293 = scmp.ne.s32.totalorder %s276, %s292
      %p294 = scmp.eq.s32.totalorder %s32, 0
      %p295 = por %p293, %p294
      %p296 = scmp.le.s32.totalorder 1, %s26
      %p297 = scmp.lt.s32.totalorder %s26, 3
      %p298 = pnand %p296, %p297
      %p299 = pneg %p298
      // Predicated region
      $region9: #{tpu_custom_call.1} parent=5 // pred_check
        _
      $region10: #{tpu_custom_call.1} parent=5 // pred_check_branch
        %301 = sbr.rel (%p298) target = $region12
      $region11: #{tpu_custom_call.1} parent=5 // pred_region
        %s302 = ssub.s32 %s26, 1
        // Predicated region
        $region13: #{tpu_custom_call.1} parent=11 // pred_check
          %p303 = pneg %p73
        $region14: #{tpu_custom_call.1} parent=11 // pred_check_branch
          %305 = sbr.rel (%p303) target = $region16
        $region15: #{tpu_custom_call.1} parent=11 // pred_region
          %s307 = ssub.s32 6272, 6272
          %308 = vsyncadd [#allocation6], %s307
          %s309 = sshll.u32 [#allocation5], 4
          %s310 = int_to_ptr.vmem [resolvable:$true] %s309
          %315 = dma.hbm_to_vmem [thread:$0]  %s1, 6272, %s310, [#allocation6], 64, 64, 4
        $region16: #{tpu_custom_call.1} parent=11 // pred_fallthru
          _
        // Predicated region
        $region17: #{tpu_custom_call.1} parent=11 // pred_check
          %p316 = pneg %p94
        $region18: #{tpu_custom_call.1} parent=11 // pred_check_branch
          %318 = sbr.rel (%p316) target = $region20
        $region19: #{tpu_custom_call.1} parent=11 // pred_region
          _
        $region20: #{tpu_custom_call.1} parent=11 // pred_fallthru
          _
        // Predicated region
        $region21: #{tpu_custom_call.1} parent=11 // pred_check
          %p319 = pneg %p115
        $region22: #{tpu_custom_call.1} parent=11 // pred_check_branch
          %321 = sbr.rel (%p319) target = $region24
        $region23: #{tpu_custom_call.1} parent=11 // pred_region
          %s323 = ssub.s32 1024, 1024
          %324 = vsyncadd [#allocation6], %s323
          %s325 = sshll.u32 [#allocation7], 4
          %s326 = int_to_ptr.vmem [resolvable:$true] %s325
          %331 = dma.hbm_to_vmem [thread:$0]  %s3, 1024, %s326, [#allocation6], 64, 64, 4
        $region24: #{tpu_custom_call.1} parent=11 // pred_fallthru
          _
        // Predicated region
        $region25: #{tpu_custom_call.1} parent=11 // pred_check
          %p332 = pneg %p136
        $region26: #{tpu_custom_call.1} parent=11 // pred_check_branch
          %334 = sbr.rel (%p332) target = $region28
        $region27: #{tpu_custom_call.1} parent=11 // pred_region
          _
        $region28: #{tpu_custom_call.1} parent=11 // pred_fallthru
          _
        // Predicated region
        $region29: #{tpu_custom_call.1} parent=11 // pred_check
          %p335 = pneg %p157
        $region30: #{tpu_custom_call.1} parent=11 // pred_check_branch
          %337 = sbr.rel (%p335) target = $region32
        $region31: #{tpu_custom_call.1} parent=11 // pred_region
          %s339 = ssub.s32 1024, 1024
          %340 = vsyncadd [#allocation9], %s339
          %s341 = sshll.u32 [#allocation8], 4
          %s342 = int_to_ptr.vmem [resolvable:$true] %s341
          %347 = dma.hbm_to_vmem [thread:$0]  %s5, 1024, %s342, [#allocation9], 64, 64, 4
        $region32: #{tpu_custom_call.1} parent=11 // pred_fallthru
          _
        // Predicated region
        $region33: #{tpu_custom_call.1} parent=11 // pred_check
          %p348 = pneg %p178
        $region34: #{tpu_custom_call.1} parent=11 // pred_check_branch
          %350 = sbr.rel (%p348) target = $region36
        $region35: #{tpu_custom_call.1} parent=11 // pred_region
          _
        $region36: #{tpu_custom_call.1} parent=11 // pred_fallthru
          _
        // Predicated region
        $region37: #{tpu_custom_call.1} parent=11 // pred_check
          %p351 = pneg %p199
        $region38: #{tpu_custom_call.1} parent=11 // pred_check_branch
          %353 = sbr.rel (%p351) target = $region40
        $region39: #{tpu_custom_call.1} parent=11 // pred_region
          %s355 = ssub.s32 1024, 1024
          %356 = vsyncadd [#allocation9], %s355
          %s357 = sshll.u32 [#allocation10], 4
          %s358 = int_to_ptr.vmem [resolvable:$true] %s357
          %363 = dma.hbm_to_vmem [thread:$0]  %s7, 1024, %s358, [#allocation9], 64, 64, 4
        $region40: #{tpu_custom_call.1} parent=11 // pred_fallthru
          _
        // Predicated region
        $region41: #{tpu_custom_call.1} parent=11 // pred_check
          %p364 = pneg %p220
        $region42: #{tpu_custom_call.1} parent=11 // pred_check_branch
          %366 = sbr.rel (%p364) target = $region44
        $region43: #{tpu_custom_call.1} parent=11 // pred_region
          _
        $region44: #{tpu_custom_call.1} parent=11 // pred_fallthru
          _
        // Predicated region
        $region45: #{tpu_custom_call.1} parent=11 // pred_check
          %p367 = pneg %p241
        $region46: #{tpu_custom_call.1} parent=11 // pred_check_branch
          %369 = sbr.rel (%p367) target = $region48
        $region47: #{tpu_custom_call.1} parent=11 // pred_region
          %s371 = ssub.s32 1024, 1024
          %372 = vsyncadd [#allocation12], %s371
          %s373 = sshll.u32 [#allocation11], 4
          %s374 = int_to_ptr.vmem [resolvable:$true] %s373
          %379 = dma.hbm_to_vmem [thread:$0]  %s9, 1024, %s374, [#allocation12], 64, 64, 4
        $region48: #{tpu_custom_call.1} parent=11 // pred_fallthru
          _
        // Predicated region
        $region49: #{tpu_custom_call.1} parent=11 // pred_check
          %p380 = pneg %p262
        $region50: #{tpu_custom_call.1} parent=11 // pred_check_branch
          %382 = sbr.rel (%p380) target = $region52
        $region51: #{tpu_custom_call.1} parent=11 // pred_region
          _
        $region52: #{tpu_custom_call.1} parent=11 // pred_fallthru
          _
      $region12: #{tpu_custom_call.1} parent=5 // pred_fallthru
        _
      %p383 = scmp.lt.s32.totalorder %s26, 2
      // Predicated region
      $region53: #{tpu_custom_call.1} parent=5 // pred_check
        %p384 = pneg %p383
      $region54: #{tpu_custom_call.1} parent=5 // pred_check_branch
        %386 = sbr.rel (%p384) target = $region56
      $region55: #{tpu_custom_call.1} parent=5 // pred_region
        // Predicated region
        $region57: #{tpu_custom_call.1} parent=55 // pred_check
          %p387 = pneg %p46
        $region58: #{tpu_custom_call.1} parent=55 // pred_check_branch
          %389 = sbr.rel (%p387) target = $region60
        $region59: #{tpu_custom_call.1} parent=55 // pred_region
          %s390 = sand.u32 %s36, 1
          %s391 = scalar_lea.sflag [#allocation3], %s390
          %s392 = sand.u32 %s36, 1
          %s393 = smul.addr %s392, 56
          %s394 = scalar_lea.vmem [#allocation2], %s393
          %s395 = smul.u32 2, %s26
          %s397 = ssub.s32 896, 896
          %398 = vsyncadd %s391, %s397
          %s399 = smul.addr %s395, 7
          %s400 = smul.addr %s399, 64
          %s401 = scalar_lea.hbm %s0, %s400
          %s402 = sshll.u32 %s394, 4
          %s403 = int_to_ptr.vmem [resolvable:$true] %s402
          %408 = dma.hbm_to_vmem [thread:$0]  %s401, 896, %s403, %s391, 448, 448, 28
        $region60: #{tpu_custom_call.1} parent=55 // pred_fallthru
          _
      $region56: #{tpu_custom_call.1} parent=5 // pred_fallthru
        _
      %p409 = scmp.le.s32.totalorder 1, %s26
      %p410 = scmp.lt.s32.totalorder %s26, 3
      %p411 = pnand %p409, %p410
      %p412 = pneg %p411
      // Predicated region
      $region61: #{tpu_custom_call.1} parent=5 // pred_check
        _
      $region62: #{tpu_custom_call.1} parent=5 // pred_check_branch
        %414 = sbr.rel (%p411) target = $region64
      $region63: #{tpu_custom_call.1} parent=5 // pred_region
        %s415 = ssub.s32 %s26, 1
        %s416 = sand.u32 %s39, 1
        %s417 = scalar_lea.sflag [#allocation3], %s416
        %s418 = sand.u32 %s39, 1
        %s419 = smul.addr %s418, 56
        %s420 = scalar_lea.vmem [#allocation2], %s419
        // Predicated region
        $region65: #{tpu_custom_call.1} parent=63 // pred_check
          %p421 = pneg %p52
        $region66: #{tpu_custom_call.1} parent=63 // pred_check_branch
          %423 = sbr.rel (%p421) target = $region68
        $region67: #{tpu_custom_call.1} parent=63 // pred_region
          %424 = dma.done %s417, 896
        $region68: #{tpu_custom_call.1} parent=63 // pred_fallthru
          _
        // Predicated region
        $region69: #{tpu_custom_call.1} parent=63 // pred_check
          %p425 = pneg %p73
        $region70: #{tpu_custom_call.1} parent=63 // pred_check_branch
          %427 = sbr.rel (%p425) target = $region72
        $region71: #{tpu_custom_call.1} parent=63 // pred_region
          %428 = dma.done [#allocation6], 6272
        $region72: #{tpu_custom_call.1} parent=63 // pred_fallthru
          _
        // Predicated region
        $region73: #{tpu_custom_call.1} parent=63 // pred_check
          %p429 = pneg %p115
        $region74: #{tpu_custom_call.1} parent=63 // pred_check_branch
          %431 = sbr.rel (%p429) target = $region76
        $region75: #{tpu_custom_call.1} parent=63 // pred_region
          %432 = dma.done [#allocation6], 1024
        $region76: #{tpu_custom_call.1} parent=63 // pred_fallthru
          _
        // Predicated region
        $region77: #{tpu_custom_call.1} parent=63 // pred_check
          %p433 = pneg %p157
        $region78: #{tpu_custom_call.1} parent=63 // pred_check_branch
          %435 = sbr.rel (%p433) target = $region80
        $region79: #{tpu_custom_call.1} parent=63 // pred_region
          %436 = dma.done [#allocation9], 1024
        $region80: #{tpu_custom_call.1} parent=63 // pred_fallthru
          _
        // Predicated region
        $region81: #{tpu_custom_call.1} parent=63 // pred_check
          %p437 = pneg %p199
        $region82: #{tpu_custom_call.1} parent=63 // pred_check_branch
          %439 = sbr.rel (%p437) target = $region84
        $region83: #{tpu_custom_call.1} parent=63 // pred_region
          %440 = dma.done [#allocation9], 1024
        $region84: #{tpu_custom_call.1} parent=63 // pred_fallthru
          _
        // Predicated region
        $region85: #{tpu_custom_call.1} parent=63 // pred_check
          %p441 = pneg %p241
        $region86: #{tpu_custom_call.1} parent=63 // pred_check_branch
          %443 = sbr.rel (%p441) target = $region88
        $region87: #{tpu_custom_call.1} parent=63 // pred_region
          %444 = dma.done [#allocation12], 1024
        $region88: #{tpu_custom_call.1} parent=63 // pred_fallthru
          _
        %s445 = sand.u32 %s39, 1
        %s446 = scalar_lea.sflag [#allocation3], %s445
        %s447 = sand.u32 %s39, 1
        %s448 = smul.addr %s447, 56
        %s449 = scalar_lea.vmem [#allocation2], %s448
        %p450 = pneg %p52
        %p451 = pneg %p49
        %p452 = pneg %p73
        %p453 = pneg %p70
        %p454 = pneg %p94
        %p455 = pneg %p91
        %p456 = pneg %p115
        %p457 = pneg %p112
        %p458 = pneg %p136
        %p459 = pneg %p133
        %p460 = pneg %p157
        %p461 = pneg %p154
        %p462 = pneg %p178
        %p463 = pneg %p175
        %p464 = pneg %p199
        %p465 = pneg %p196
        %p466 = pneg %p220
        %p467 = pneg %p217
        %p468 = pneg %p241
        %p469 = pneg %p238
        %p470 = pneg %p262
        %p471 = pneg %p259
        %p472 = pneg %p288
        %p473 = pneg %p285
        %s474 = sand.u32 %s275, 1
        %s475 = scalar_lea.sflag [#allocation4], %s474
        %s476 = sand.u32 %s275, 1
        %s477 = smul.addr %s476, 8
        %s478 = scalar_lea.vmem [#allocation13], %s477
        %s479 = smul.u32 2, %s31
        %s480 = smul.u32 2, %s31
        %v482 = vld [vmem:[%s420] sm:$0xff]
        %v483 = vld [vmem:[%s420 + $0x8] sm:$0xff]
        %v484 = vld [vmem:[%s420 + $0x10] sm:$0xff]
        %v485 = vld [vmem:[%s420 + $0x18] sm:$0xf]
        %v486 = vld [vmem:[%s420 + $0x1c] sm:$0xff]
        %v487 = vld [vmem:[%s420 + $0x24] sm:$0xff]
        %v488 = vld [vmem:[%s420 + $0x2c] sm:$0xff]
        %v489 = vld [vmem:[%s420 + $0x34] sm:$0xf]
        %v490 = vld [vmem:[#allocation5] sm:$0xf]
        %v491 = vld [vmem:[#allocation5 + $0x4] sm:$0xf]
        %v492 = vld [vmem:[#allocation5 + $0x8] sm:$0xf]
        %v493 = vld [vmem:[#allocation5 + $0xc] sm:$0xf]
        %v494 = vld [vmem:[#allocation5 + $0x10] sm:$0xf]
        %v495 = vld [vmem:[#allocation5 + $0x14] sm:$0xf]
        %v496 = vld [vmem:[#allocation5 + $0x18] sm:$0xf]
        %v497 = vld [vmem:[#allocation5 + $0x1c] sm:$0xf]
        %v498 = vld [vmem:[#allocation5 + $0x20] sm:$0xf]
        %v499 = vld [vmem:[#allocation5 + $0x24] sm:$0xf]
        %v500 = vld [vmem:[#allocation5 + $0x28] sm:$0xf]
        %v501 = vld [vmem:[#allocation5 + $0x2c] sm:$0xf]
        %v502 = vld [vmem:[#allocation5 + $0x30] sm:$0xf]
        %v503 = vld [vmem:[#allocation5 + $0x34] sm:$0xf]
        %v504 = vld [vmem:[#allocation5 + $0x38] sm:$0xf]
        %v505 = vld [vmem:[#allocation5 + $0x3c] sm:$0xf]
        %v506 = vld [vmem:[#allocation5 + $0x40] sm:$0xf]
        %v507 = vld [vmem:[#allocation5 + $0x44] sm:$0xf]
        %v508 = vld [vmem:[#allocation5 + $0x48] sm:$0xf]
        %v509 = vld [vmem:[#allocation5 + $0x4c] sm:$0xf]
        %v510 = vld [vmem:[#allocation5 + $0x50] sm:$0xf]
        %v511 = vld [vmem:[#allocation5 + $0x54] sm:$0xf]
        %v512 = vld [vmem:[#allocation5 + $0x58] sm:$0xf]
        %v513 = vld [vmem:[#allocation5 + $0x5c] sm:$0xf]
        %v514 = vld [vmem:[#allocation5 + $0x60] sm:$0xf]
        %v515 = vld [vmem:[#allocation5 + $0x64] sm:$0xf]
        %v516 = vld [vmem:[#allocation5 + $0x68] sm:$0xf]
        %v517 = vld [vmem:[#allocation5 + $0x6c] sm:$0xf]
        %v518 = vld [vmem:[#allocation5 + $0x70] sm:$0xf]
        %v519 = vld [vmem:[#allocation5 + $0x74] sm:$0xf]
        %v520 = vld [vmem:[#allocation5 + $0x78] sm:$0xf]
        %v521 = vld [vmem:[#allocation5 + $0x7c] sm:$0xf]
        %v522 = vld [vmem:[#allocation5 + $0x80] sm:$0xf]
        %v523 = vld [vmem:[#allocation5 + $0x84] sm:$0xf]
        %v524 = vld [vmem:[#allocation5 + $0x88] sm:$0xf]
        %v525 = vld [vmem:[#allocation5 + $0x8c] sm:$0xf]
        %v526 = vld [vmem:[#allocation5 + $0x90] sm:$0xf]
        %v527 = vld [vmem:[#allocation5 + $0x94] sm:$0xf]
        %v528 = vld [vmem:[#allocation5 + $0x98] sm:$0xf]
        %v529 = vld [vmem:[#allocation5 + $0x9c] sm:$0xf]
        %v530 = vld [vmem:[#allocation5 + $0xa0] sm:$0xf]
        %v531 = vld [vmem:[#allocation5 + $0xa4] sm:$0xf]
        %v532 = vld [vmem:[#allocation5 + $0xa8] sm:$0xf]
        %v533 = vld [vmem:[#allocation5 + $0xac] sm:$0xf]
        %v534 = vld [vmem:[#allocation5 + $0xb0] sm:$0xf]
        %v535 = vld [vmem:[#allocation5 + $0xb4] sm:$0xf]
        %v536 = vld [vmem:[#allocation5 + $0xb8] sm:$0xf]
        %v537 = vld [vmem:[#allocation5 + $0xbc] sm:$0xf]
        %v538 = vld [vmem:[#allocation5 + $0xc0] sm:$0xf]
        %v539 = vld [vmem:[#allocation5 + $0xc4] sm:$0xf]
        %v540 = vld [vmem:[#allocation5 + $0xc8] sm:$0xf]
        %v541 = vld [vmem:[#allocation5 + $0xcc] sm:$0xf]
        %v542 = vld [vmem:[#allocation5 + $0xd0] sm:$0xf]
        %v543 = vld [vmem:[#allocation5 + $0xd4] sm:$0xf]
        %v544 = vld [vmem:[#allocation5 + $0xd8] sm:$0xf]
        %v545 = vld [vmem:[#allocation5 + $0xdc] sm:$0xf]
        %v546 = vld [vmem:[#allocation5 + $0xe0] sm:$0xf]
        %v547 = vld [vmem:[#allocation5 + $0xe4] sm:$0xf]
        %v548 = vld [vmem:[#allocation5 + $0xe8] sm:$0xf]
        %v549 = vld [vmem:[#allocation5 + $0xec] sm:$0xf]
        %v550 = vld [vmem:[#allocation5 + $0xf0] sm:$0xf]
        %v551 = vld [vmem:[#allocation5 + $0xf4] sm:$0xf]
        %v552 = vld [vmem:[#allocation5 + $0xf8] sm:$0xf]
        %v553 = vld [vmem:[#allocation5 + $0xfc] sm:$0xf]
        %v554 = vld [vmem:[#allocation5 + $0x100] sm:$0xf]
        %v555 = vld [vmem:[#allocation5 + $0x104] sm:$0xf]
        %v556 = vld [vmem:[#allocation5 + $0x108] sm:$0xf]
        %v557 = vld [vmem:[#allocation5 + $0x10c] sm:$0xf]
        %v558 = vld [vmem:[#allocation5 + $0x110] sm:$0xf]
        %v559 = vld [vmem:[#allocation5 + $0x114] sm:$0xf]
        %v560 = vld [vmem:[#allocation5 + $0x118] sm:$0xf]
        %v561 = vld [vmem:[#allocation5 + $0x11c] sm:$0xf]
        %v562 = vld [vmem:[#allocation5 + $0x120] sm:$0xf]
        %v563 = vld [vmem:[#allocation5 + $0x124] sm:$0xf]
        %v564 = vld [vmem:[#allocation5 + $0x128] sm:$0xf]
        %v565 = vld [vmem:[#allocation5 + $0x12c] sm:$0xf]
        %v566 = vld [vmem:[#allocation5 + $0x130] sm:$0xf]
        %v567 = vld [vmem:[#allocation5 + $0x134] sm:$0xf]
        %v568 = vld [vmem:[#allocation5 + $0x138] sm:$0xf]
        %v569 = vld [vmem:[#allocation5 + $0x13c] sm:$0xf]
        %v570 = vld [vmem:[#allocation5 + $0x140] sm:$0xf]
        %v571 = vld [vmem:[#allocation5 + $0x144] sm:$0xf]
        %v572 = vld [vmem:[#allocation5 + $0x148] sm:$0xf]
        %v573 = vld [vmem:[#allocation5 + $0x14c] sm:$0xf]
        %v574 = vld [vmem:[#allocation5 + $0x150] sm:$0xf]
        %v575 = vld [vmem:[#allocation5 + $0x154] sm:$0xf]
        %v576 = vld [vmem:[#allocation5 + $0x158] sm:$0xf]
        %v577 = vld [vmem:[#allocation5 + $0x15c] sm:$0xf]
        %v578 = vld [vmem:[#allocation5 + $0x160] sm:$0xf]
        %v579 = vld [vmem:[#allocation5 + $0x164] sm:$0xf]
        %v580 = vld [vmem:[#allocation5 + $0x168] sm:$0xf]
        %v581 = vld [vmem:[#allocation5 + $0x16c] sm:$0xf]
        %v582 = vld [vmem:[#allocation5 + $0x170] sm:$0xf]
        %v583 = vld [vmem:[#allocation5 + $0x174] sm:$0xf]
        %v584 = vld [vmem:[#allocation5 + $0x178] sm:$0xf]
        %v585 = vld [vmem:[#allocation5 + $0x17c] sm:$0xf]
        %v586 = vld [vmem:[#allocation5 + $0x180] sm:$0xf]
        %v587 = vld [vmem:[#allocation5 + $0x184] sm:$0xf]
        %v588 = vld [vmem:[%s2] sm:$0x1]
        %v590 = vlaneseq
        %v591 = vshrl.u32 %v590, 7
        %v592 = vsub.s32 0, %v591
        %v593 = vrot.slane %v588, %v592
        %v603 = vunpack.c.l.b16 %v482
        %v604 = vunpack.c.h.b16 %v482
        %v605 = vunpack.c.l.b16 %v483
        %v606 = vunpack.c.h.b16 %v483
        %v607 = vunpack.c.l.b16 %v484
        %v608 = vunpack.c.h.b16 %v484
        %v609 = vunpack.c.l.b16 %v485
        %v610 = vunpack.c.l.b16 %v486
        %v611 = vunpack.c.h.b16 %v486
        %v612 = vunpack.c.l.b16 %v487
        %v613 = vunpack.c.h.b16 %v487
        %v614 = vunpack.c.l.b16 %v488
        %v615 = vunpack.c.h.b16 %v488
        %v616 = vunpack.c.l.b16 %v489
        %v617 = vpack.c.b16 %v610, %v603
        %v618 = vpack.c.b16 %v611, %v604
        %v619 = vpack.c.b16 %v612, %v605
        %v620 = vpack.c.b16 %v613, %v606
        %v621 = vpack.c.b16 %v614, %v607
        %v622 = vpack.c.b16 %v615, %v608
        %v623 = vpack.c.b16 %v616, %v609
        %v728 = vunpack.c.l.b16 %v490
        %v729 = vunpack.c.l.b16 %v491
        %v730 = vunpack.c.l.b16 %v492
        %v731 = vunpack.c.l.b16 %v493
        %v732 = vunpack.c.l.b16 %v494
        %v733 = vunpack.c.l.b16 %v495
        %v734 = vunpack.c.l.b16 %v496
        %v735 = vunpack.c.l.b16 %v497
        %v736 = vunpack.c.l.b16 %v498
        %v737 = vunpack.c.l.b16 %v499
        %v738 = vunpack.c.l.b16 %v500
        %v739 = vunpack.c.l.b16 %v501
        %v740 = vunpack.c.l.b16 %v502
        %v741 = vunpack.c.l.b16 %v503
        %v742 = vunpack.c.l.b16 %v504
        %v743 = vunpack.c.l.b16 %v505
        %v744 = vunpack.c.l.b16 %v506
        %v745 = vunpack.c.l.b16 %v507
        %v746 = vunpack.c.l.b16 %v508
        %v747 = vunpack.c.l.b16 %v509
        %v748 = vunpack.c.l.b16 %v510
        %v749 = vunpack.c.l.b16 %v511
        %v750 = vunpack.c.l.b16 %v512
        %v751 = vunpack.c.l.b16 %v513
        %v752 = vunpack.c.l.b16 %v514
        %v753 = vunpack.c.l.b16 %v515
        %v754 = vunpack.c.l.b16 %v516
        %v755 = vunpack.c.l.b16 %v517
        %v756 = vunpack.c.l.b16 %v518
        %v757 = vunpack.c.l.b16 %v519
        %v758 = vunpack.c.l.b16 %v520
        %v759 = vunpack.c.l.b16 %v521
        %v760 = vunpack.c.l.b16 %v522
        %v761 = vunpack.c.l.b16 %v523
        %v762 = vunpack.c.l.b16 %v524
        %v763 = vunpack.c.l.b16 %v525
        %v764 = vunpack.c.l.b16 %v526
        %v765 = vunpack.c.l.b16 %v527
        %v766 = vunpack.c.l.b16 %v528
        %v767 = vunpack.c.l.b16 %v529
        %v768 = vunpack.c.l.b16 %v530
        %v769 = vunpack.c.l.b16 %v531
        %v770 = vunpack.c.l.b16 %v532
        %v771 = vunpack.c.l.b16 %v533
        %v772 = vunpack.c.l.b16 %v534
        %v773 = vunpack.c.l.b16 %v535
        %v774 = vunpack.c.l.b16 %v536
        %v775 = vunpack.c.l.b16 %v537
        %v776 = vunpack.c.l.b16 %v538
        %v777 = vunpack.c.l.b16 %v539
        %v778 = vunpack.c.l.b16 %v540
        %v779 = vunpack.c.l.b16 %v541
        %v780 = vunpack.c.l.b16 %v542
        %v781 = vunpack.c.l.b16 %v543
        %v782 = vunpack.c.l.b16 %v544
        %v783 = vunpack.c.l.b16 %v545
        %v784 = vunpack.c.l.b16 %v546
        %v785 = vunpack.c.l.b16 %v547
        %v786 = vunpack.c.l.b16 %v548
        %v787 = vunpack.c.l.b16 %v549
        %v788 = vunpack.c.l.b16 %v550
        %v789 = vunpack.c.l.b16 %v551
        %v790 = vunpack.c.l.b16 %v552
        %v791 = vunpack.c.l.b16 %v553
        %v792 = vunpack.c.l.b16 %v554
        %v793 = vunpack.c.l.b16 %v555
        %v794 = vunpack.c.l.b16 %v556
        %v795 = vunpack.c.l.b16 %v557
        %v796 = vunpack.c.l.b16 %v558
        %v797 = vunpack.c.l.b16 %v559
        %v798 = vunpack.c.l.b16 %v560
        %v799 = vunpack.c.l.b16 %v561
        %v800 = vunpack.c.l.b16 %v562
        %v801 = vunpack.c.l.b16 %v563
        %v802 = vunpack.c.l.b16 %v564
        %v803 = vunpack.c.l.b16 %v565
        %v804 = vunpack.c.l.b16 %v566
        %v805 = vunpack.c.l.b16 %v567
        %v806 = vunpack.c.l.b16 %v568
        %v807 = vunpack.c.l.b16 %v569
        %v808 = vunpack.c.l.b16 %v570
        %v809 = vunpack.c.l.b16 %v571
        %v810 = vunpack.c.l.b16 %v572
        %v811 = vunpack.c.l.b16 %v573
        %v812 = vunpack.c.l.b16 %v574
        %v813 = vunpack.c.l.b16 %v575
        %v814 = vunpack.c.l.b16 %v576
        %v815 = vunpack.c.l.b16 %v577
        %v816 = vunpack.c.l.b16 %v578
        %v817 = vunpack.c.l.b16 %v579
        %v818 = vunpack.c.l.b16 %v580
        %v819 = vunpack.c.l.b16 %v581
        %v820 = vunpack.c.l.b16 %v582
        %v821 = vunpack.c.l.b16 %v583
        %v822 = vunpack.c.l.b16 %v584
        %v823 = vunpack.c.l.b16 %v585
        %v824 = vunpack.c.l.b16 %v586
        %v825 = vunpack.c.l.b16 %v587
        %v826 = vpack.c.b16 %v729, %v728
        %v827 = vpack.c.b16 %v731, %v730
        %v828 = vpack.c.b16 %v733, %v732
        %v829 = vpack.c.b16 %v735, %v734
        %v830 = vpack.c.b16 %v737, %v736
        %v831 = vpack.c.b16 %v739, %v738
        %v832 = vpack.c.b16 %v741, %v740
        %v833 = vpack.c.b16 %v743, %v742
        %v834 = vpack.c.b16 %v745, %v744
        %v835 = vpack.c.b16 %v747, %v746
        %v836 = vpack.c.b16 %v749, %v748
        %v837 = vpack.c.b16 %v751, %v750
        %v838 = vpack.c.b16 %v753, %v752
        %v839 = vpack.c.b16 %v755, %v754
        %v840 = vpack.c.b16 %v757, %v756
        %v841 = vpack.c.b16 %v759, %v758
        %v842 = vpack.c.b16 %v761, %v760
        %v843 = vpack.c.b16 %v763, %v762
        %v844 = vpack.c.b16 %v765, %v764
        %v845 = vpack.c.b16 %v767, %v766
        %v846 = vpack.c.b16 %v769, %v768
        %v847 = vpack.c.b16 %v771, %v770
        %v848 = vpack.c.b16 %v773, %v772
        %v849 = vpack.c.b16 %v775, %v774
        %v850 = vpack.c.b16 %v777, %v776
        %v851 = vpack.c.b16 %v779, %v778
        %v852 = vpack.c.b16 %v781, %v780
        %v853 = vpack.c.b16 %v783, %v782
        %v854 = vpack.c.b16 %v785, %v784
        %v855 = vpack.c.b16 %v787, %v786
        %v856 = vpack.c.b16 %v789, %v788
        %v857 = vpack.c.b16 %v791, %v790
        %v858 = vpack.c.b16 %v793, %v792
        %v859 = vpack.c.b16 %v795, %v794
        %v860 = vpack.c.b16 %v797, %v796
        %v861 = vpack.c.b16 %v799, %v798
        %v862 = vpack.c.b16 %v801, %v800
        %v863 = vpack.c.b16 %v803, %v802
        %v864 = vpack.c.b16 %v805, %v804
        %v865 = vpack.c.b16 %v807, %v806
        %v866 = vpack.c.b16 %v809, %v808
        %v867 = vpack.c.b16 %v811, %v810
        %v868 = vpack.c.b16 %v813, %v812
        %v869 = vpack.c.b16 %v815, %v814
        %v870 = vpack.c.b16 %v817, %v816
        %v871 = vpack.c.b16 %v819, %v818
        %v872 = vpack.c.b16 %v821, %v820
        %v873 = vpack.c.b16 %v823, %v822
        %v874 = vpack.c.b16 %v825, %v824
        %vm924 = vcmask 130048
        %v926 = vsel %vm924, %v623, 0
        %928 = vmatprep.subr.bf16.mxu0 0
        %929 = vmatpush1.bf16.msra.mxu0 %v826
        %930 = vmatprep.subr.bf16.mxu0 0
        %931 = vmatpush1.bf16.msra.mxu0 %v827
        %932 = vmatprep.subr.bf16.mxu0 0
        %933 = vmatpush1.bf16.msra.mxu0 %v828
        %934 = vmatprep.subr.bf16.mxu0 0
        %935 = vmatpush1.bf16.msra.mxu0 %v829
        %936 = vmatprep.subr.bf16.mxu0 0
        %937 = vmatpush1.bf16.msra.mxu0 %v830
        %938 = vmatprep.subr.bf16.mxu0 0
        %939 = vmatpush1.bf16.msra.mxu0 %v831
        %940 = vmatprep.subr.bf16.mxu0 0
        %941 = vmatpush1.bf16.msra.mxu0 %v832
        %942 = vmatprep.subr.bf16.mxu0 0
        %943 = vmatpush1.bf16.msra.mxu0 %v833
        %944 = vmatprep.subr.bf16.mxu0 0
        %945 = vmatpush1.bf16.msra.mxu0 %v834
        %946 = vmatprep.subr.bf16.mxu0 0
        %947 = vmatpush1.bf16.msra.mxu0 %v835
        %948 = vmatprep.subr.bf16.mxu0 0
        %949 = vmatpush1.bf16.msra.mxu0 %v836
        %950 = vmatprep.subr.bf16.mxu0 0
        %951 = vmatpush1.bf16.msra.mxu0 %v837
        %952 = vmatprep.subr.bf16.mxu0 0
        %953 = vmatpush1.bf16.msra.mxu0 %v838
        %954 = vmatprep.subr.bf16.mxu0 0
        %955 = vmatpush1.bf16.msra.mxu0 %v839
        %956 = vmatprep.subr.bf16.mxu0 0
        %957 = vmatpush1.bf16.msra.mxu0 %v840
        %958 = vmatprep.subr.bf16.mxu0 0
        %959 = vmatpush1.bf16.msra.mxu0 %v841
        %960 = vmatprep.mubr.bf16.mxu0 %v618
        %961 = vmatmul.mubr.bf16.gmra.mrb[0].mxu0 %v617
        %v962 = vpop.f32.mrb[0].mxu0
        %v963 = vadd.f32 %v593, %v962
        %v964 = vpop.f32.mrb[0].mxu0
        %v965 = vpop.f32.mrb[0].mxu0
        %v966 = vadd.f32 %v593, %v965
        %v967 = vpop.f32.mrb[0].mxu0
        %968 = vdwg.mxu0
        %969 = vmatprep.subr.bf16.mxu0 0
        %970 = vmatpush1.bf16.msra.mxu0 %v842
        %971 = vmatprep.subr.bf16.mxu0 0
        %972 = vmatpush1.bf16.msra.mxu0 %v843
        %973 = vmatprep.subr.bf16.mxu0 0
        %974 = vmatpush1.bf16.msra.mxu0 %v844
        %975 = vmatprep.subr.bf16.mxu0 0
        %976 = vmatpush1.bf16.msra.mxu0 %v845
        %977 = vmatprep.subr.bf16.mxu0 0
        %978 = vmatpush1.bf16.msra.mxu0 %v846
        %979 = vmatprep.subr.bf16.mxu0 0
        %980 = vmatpush1.bf16.msra.mxu0 %v847
        %981 = vmatprep.subr.bf16.mxu0 0
        %982 = vmatpush1.bf16.msra.mxu0 %v848
        %983 = vmatprep.subr.bf16.mxu0 0
        %984 = vmatpush1.bf16.msra.mxu0 %v849
        %985 = vmatprep.subr.bf16.mxu0 0
        %986 = vmatpush1.bf16.msra.mxu0 %v850
        %987 = vmatprep.subr.bf16.mxu0 0
        %988 = vmatpush1.bf16.msra.mxu0 %v851
        %989 = vmatprep.subr.bf16.mxu0 0
        %990 = vmatpush1.bf16.msra.mxu0 %v852
        %991 = vmatprep.subr.bf16.mxu0 0
        %992 = vmatpush1.bf16.msra.mxu0 %v853
        %993 = vmatprep.subr.bf16.mxu0 0
        %994 = vmatpush1.bf16.msra.mxu0 %v854
        %995 = vmatprep.subr.bf16.mxu0 0
        %996 = vmatpush1.bf16.msra.mxu0 %v855
        %997 = vmatprep.subr.bf16.mxu0 0
        %998 = vmatpush1.bf16.msra.mxu0 %v856
        %999 = vmatprep.subr.bf16.mxu0 0
        %1000 = vmatpush1.bf16.msra.mxu0 %v857
        %1001 = vmatprep.mubr.bf16.mxu0 %v620
        %1002 = vmatmul.mubr.bf16.gmra.mrb[0].mxu0 %v619
        %v1003 = vpop.f32.mrb[0].mxu0
        %v1004 = vadd.f32 %v963, %v1003
        %v1005 = vpop.f32.mrb[0].mxu0
        %v1006 = vpop.f32.mrb[0].mxu0
        %v1007 = vadd.f32 %v966, %v1006
        %v1008 = vpop.f32.mrb[0].mxu0
        %1009 = vdwg.mxu0
        %1010 = vmatprep.subr.bf16.mxu0 0
        %1011 = vmatpush1.bf16.msra.mxu0 %v858
        %1012 = vmatprep.subr.bf16.mxu0 0
        %1013 = vmatpush1.bf16.msra.mxu0 %v859
        %1014 = vmatprep.subr.bf16.mxu0 0
        %1015 = vmatpush1.bf16.msra.mxu0 %v860
        %1016 = vmatprep.subr.bf16.mxu0 0
        %1017 = vmatpush1.bf16.msra.mxu0 %v861
        %1018 = vmatprep.subr.bf16.mxu0 0
        %1019 = vmatpush1.bf16.msra.mxu0 %v862
        %1020 = vmatprep.subr.bf16.mxu0 0
        %1021 = vmatpush1.bf16.msra.mxu0 %v863
        %1022 = vmatprep.subr.bf16.mxu0 0
        %1023 = vmatpush1.bf16.msra.mxu0 %v864
        %1024 = vmatprep.subr.bf16.mxu0 0
        %1025 = vmatpush1.bf16.msra.mxu0 %v865
        %1026 = vmatprep.subr.bf16.mxu0 0
        %1027 = vmatpush1.bf16.msra.mxu0 %v866
        %1028 = vmatprep.subr.bf16.mxu0 0
        %1029 = vmatpush1.bf16.msra.mxu0 %v867
        %1030 = vmatprep.subr.bf16.mxu0 0
        %1031 = vmatpush1.bf16.msra.mxu0 %v868
        %1032 = vmatprep.subr.bf16.mxu0 0
        %1033 = vmatpush1.bf16.msra.mxu0 %v869
        %1034 = vmatprep.subr.bf16.mxu0 0
        %1035 = vmatpush1.bf16.msra.mxu0 %v870
        %1036 = vmatprep.subr.bf16.mxu0 0
        %1037 = vmatpush1.bf16.msra.mxu0 %v871
        %1038 = vmatprep.subr.bf16.mxu0 0
        %1039 = vmatpush1.bf16.msra.mxu0 %v872
        %1040 = vmatprep.subr.bf16.mxu0 0
        %1041 = vmatpush1.bf16.msra.mxu0 %v873
        %1042 = vmatprep.mubr.bf16.mxu0 %v622
        %1043 = vmatmul.mubr.bf16.gmra.mrb[0].mxu0 %v621
        %v1044 = vpop.f32.mrb[0].mxu0
        %v1045 = vadd.f32 %v1004, %v1044
        %v1046 = vpop.f32.mrb[0].mxu0
        %v1047 = vpop.f32.mrb[0].mxu0
        %v1048 = vadd.f32 %v1007, %v1047
        %v1049 = vpop.f32.mrb[0].mxu0
        %1050 = vdwg.mxu0
        %1051 = vmatprep.subr.bf16.mxu0 0
        %1052 = vmatpush1.bf16.msra.mxu0 %v874
        %1053 = vmatprep.subr.bf16.mxu0 0
        %1054 = vmatpush1.bf16.msra.mxu0 0
        %1055 = vmatprep.subr.bf16.mxu0 0
        %1056 = vmatpush1.bf16.msra.mxu0 0
        %1057 = vmatprep.subr.bf16.mxu0 0
        %1058 = vmatpush1.bf16.msra.mxu0 0
        %1059 = vmatprep.subr.bf16.mxu0 0
        %1060 = vmatpush1.bf16.msra.mxu0 0
        %1061 = vmatprep.subr.bf16.mxu0 0
        %1062 = vmatpush1.bf16.msra.mxu0 0
        %1063 = vmatprep.subr.bf16.mxu0 0
        %1064 = vmatpush1.bf16.msra.mxu0 0
        %1065 = vmatprep.subr.bf16.mxu0 0
        %1066 = vmatpush1.bf16.msra.mxu0 0
        %1067 = vmatprep.subr.bf16.mxu0 0
        %1068 = vmatpush1.bf16.msra.mxu0 0
        %1069 = vmatprep.subr.bf16.mxu0 0
        %1070 = vmatpush1.bf16.msra.mxu0 0
        %1071 = vmatprep.subr.bf16.mxu0 0
        %1072 = vmatpush1.bf16.msra.mxu0 0
        %1073 = vmatprep.subr.bf16.mxu0 0
        %1074 = vmatpush1.bf16.msra.mxu0 0
        %1075 = vmatprep.subr.bf16.mxu0 0
        %1076 = vmatpush1.bf16.msra.mxu0 0
        %1077 = vmatprep.subr.bf16.mxu0 0
        %1078 = vmatpush1.bf16.msra.mxu0 0
        %1079 = vmatprep.subr.bf16.mxu0 0
        %1080 = vmatpush1.bf16.msra.mxu0 0
        %1081 = vmatprep.subr.bf16.mxu0 0
        %1082 = vmatpush1.bf16.msra.mxu0 0
        %1083 = vmatprep.mubr.bf16.mxu0 0
        %1084 = vmatmul.mubr.bf16.gmra.mrb[0].mxu0 %v926
        %v1085 = vpop.f32.mrb[0].mxu0
        %v1086 = vadd.f32 %v1045, %v1085
        %v1087 = vpop.f32.mrb[0].mxu0
        %v1088 = vpop.f32.mrb[0].mxu0
        %v1089 = vadd.f32 %v1048, %v1088
        %v1090 = vpop.f32.mrb[0].mxu0
        %1091 = vdwg.mxu0
        %v1092 = vxor.u32 %v1086, 2147483648
        %v1093 = vxor.u32 %v1089, 2147483648
        %v1094 = vmul.f32 %v1092, 1.442695
        %v1095 = vpow.pop %v1094
        %v1096 = vmul.f32 %v1093, 1.442695
        %v1097 = vpow.pop %v1096
        %v1098 = vadd.f32 %v1095, 1.0
        %v1099 = vadd.f32 %v1097, 1.0
        %v1100 = vrcp.pop %v1098
        %v1101 = vmul.f32 1.0, %v1100
        %v1102 = vrcp.pop %v1099
        %v1103 = vmul.f32 1.0, %v1102
        %v1104 = vpack.c.bf16 %v1103, %v1101
        %v1105 = vld [vmem:[#allocation7] sm:$0xf]
        %v1106 = vld [vmem:[#allocation7 + $0x4] sm:$0xf]
        %v1107 = vld [vmem:[#allocation7 + $0x8] sm:$0xf]
        %v1108 = vld [vmem:[#allocation7 + $0xc] sm:$0xf]
        %v1109 = vld [vmem:[#allocation7 + $0x10] sm:$0xf]
        %v1110 = vld [vmem:[#allocation7 + $0x14] sm:$0xf]
        %v1111 = vld [vmem:[#allocation7 + $0x18] sm:$0xf]
        %v1112 = vld [vmem:[#allocation7 + $0x1c] sm:$0xf]
        %v1113 = vld [vmem:[#allocation7 + $0x20] sm:$0xf]
        %v1114 = vld [vmem:[#allocation7 + $0x24] sm:$0xf]
        %v1115 = vld [vmem:[#allocation7 + $0x28] sm:$0xf]
        %v1116 = vld [vmem:[#allocation7 + $0x2c] sm:$0xf]
        %v1117 = vld [vmem:[#allocation7 + $0x30] sm:$0xf]
        %v1118 = vld [vmem:[#allocation7 + $0x34] sm:$0xf]
        %v1119 = vld [vmem:[#allocation7 + $0x38] sm:$0xf]
        %v1120 = vld [vmem:[#allocation7 + $0x3c] sm:$0xf]
        %v1121 = vld [vmem:[%s4] sm:$0x1]
        %v1123 = vlaneseq
        %v1124 = vshrl.u32 %v1123, 7
        %v1125 = vsub.s32 0, %v1124
        %v1126 = vrot.slane %v1121, %v1125
        %v1144 = vunpack.c.l.b16 %v1105
        %v1145 = vunpack.c.l.b16 %v1106
        %v1146 = vunpack.c.l.b16 %v1107
        %v1147 = vunpack.c.l.b16 %v1108
        %v1148 = vunpack.c.l.b16 %v1109
        %v1149 = vunpack.c.l.b16 %v1110
        %v1150 = vunpack.c.l.b16 %v1111
        %v1151 = vunpack.c.l.b16 %v1112
        %v1152 = vunpack.c.l.b16 %v1113
        %v1153 = vunpack.c.l.b16 %v1114
        %v1154 = vunpack.c.l.b16 %v1115
        %v1155 = vunpack.c.l.b16 %v1116
        %v1156 = vunpack.c.l.b16 %v1117
        %v1157 = vunpack.c.l.b16 %v1118
        %v1158 = vunpack.c.l.b16 %v1119
        %v1159 = vunpack.c.l.b16 %v1120
        %v1160 = vpack.c.b16 %v1145, %v1144
        %v1161 = vpack.c.b16 %v1147, %v1146
        %v1162 = vpack.c.b16 %v1149, %v1148
        %v1163 = vpack.c.b16 %v1151, %v1150
        %v1164 = vpack.c.b16 %v1153, %v1152
        %v1165 = vpack.c.b16 %v1155, %v1154
        %v1166 = vpack.c.b16 %v1157, %v1156
        %v1167 = vpack.c.b16 %v1159, %v1158
        %1176 = vmatprep.subr.bf16.mxu0 0
        %1177 = vmatpush1.bf16.msra.mxu0 %v1160
        %1178 = vmatprep.subr.bf16.mxu0 0
        %1179 = vmatpush1.bf16.msra.mxu0 %v1161
        %1180 = vmatprep.subr.bf16.mxu0 0
        %1181 = vmatpush1.bf16.msra.mxu0 %v1162
        %1182 = vmatprep.subr.bf16.mxu0 0
        %1183 = vmatpush1.bf16.msra.mxu0 %v1163
        %1184 = vmatprep.subr.bf16.mxu0 0
        %1185 = vmatpush1.bf16.msra.mxu0 %v1164
        %1186 = vmatprep.subr.bf16.mxu0 0
        %1187 = vmatpush1.bf16.msra.mxu0 %v1165
        %1188 = vmatprep.subr.bf16.mxu0 0
        %1189 = vmatpush1.bf16.msra.mxu0 %v1166
        %1190 = vmatprep.subr.bf16.mxu0 0
        %1191 = vmatpush1.bf16.msra.mxu0 %v1167
        %1192 = vmatprep.subr.bf16.mxu0 0
        %1193 = vmatpush1.bf16.msra.mxu0 0
        %1194 = vmatprep.subr.bf16.mxu0 0
        %1195 = vmatpush1.bf16.msra.mxu0 0
        %1196 = vmatprep.subr.bf16.mxu0 0
        %1197 = vmatpush1.bf16.msra.mxu0 0
        %1198 = vmatprep.subr.bf16.mxu0 0
        %1199 = vmatpush1.bf16.msra.mxu0 0
        %1200 = vmatprep.subr.bf16.mxu0 0
        %1201 = vmatpush1.bf16.msra.mxu0 0
        %1202 = vmatprep.subr.bf16.mxu0 0
        %1203 = vmatpush1.bf16.msra.mxu0 0
        %1204 = vmatprep.subr.bf16.mxu0 0
        %1205 = vmatpush1.bf16.msra.mxu0 0
        %1206 = vmatprep.subr.bf16.mxu0 0
        %1207 = vmatpush1.bf16.msra.mxu0 0
        %1208 = vmatprep.mubr.bf16.mxu0 0
        %1209 = vmatmul.mubr.bf16.gmra.mrb[0].mxu0 %v1104
        %v1210 = vpop.f32.mrb[0].mxu0
        %v1211 = vadd.f32 %v1126, %v1210
        %v1212 = vpop.f32.mrb[0].mxu0
        %v1213 = vpop.f32.mrb[0].mxu0
        %v1214 = vadd.f32 %v1126, %v1213
        %v1215 = vpop.f32.mrb[0].mxu0
        %1216 = vdwg.mxu0
        %v1217 = vxor.u32 %v1211, 2147483648
        %v1218 = vxor.u32 %v1214, 2147483648
        %v1219 = vmul.f32 %v1217, 1.442695
        %v1220 = vpow.pop %v1219
        %v1221 = vmul.f32 %v1218, 1.442695
        %v1222 = vpow.pop %v1221
        %v1223 = vadd.f32 %v1220, 1.0
        %v1224 = vadd.f32 %v1222, 1.0
        %v1225 = vrcp.pop %v1223
        %v1226 = vmul.f32 1.0, %v1225
        %v1227 = vrcp.pop %v1224
        %v1228 = vmul.f32 1.0, %v1227
        %v1229 = vpack.c.bf16 %v1228, %v1226
        %v1230 = vld [vmem:[#allocation8] sm:$0xf]
        %v1231 = vld [vmem:[#allocation8 + $0x4] sm:$0xf]
        %v1232 = vld [vmem:[#allocation8 + $0x8] sm:$0xf]
        %v1233 = vld [vmem:[#allocation8 + $0xc] sm:$0xf]
        %v1234 = vld [vmem:[#allocation8 + $0x10] sm:$0xf]
        %v1235 = vld [vmem:[#allocation8 + $0x14] sm:$0xf]
        %v1236 = vld [vmem:[#allocation8 + $0x18] sm:$0xf]
        %v1237 = vld [vmem:[#allocation8 + $0x1c] sm:$0xf]
        %v1238 = vld [vmem:[#allocation8 + $0x20] sm:$0xf]
        %v1239 = vld [vmem:[#allocation8 + $0x24] sm:$0xf]
        %v1240 = vld [vmem:[#allocation8 + $0x28] sm:$0xf]
        %v1241 = vld [vmem:[#allocation8 + $0x2c] sm:$0xf]
        %v1242 = vld [vmem:[#allocation8 + $0x30] sm:$0xf]
        %v1243 = vld [vmem:[#allocation8 + $0x34] sm:$0xf]
        %v1244 = vld [vmem:[#allocation8 + $0x38] sm:$0xf]
        %v1245 = vld [vmem:[#allocation8 + $0x3c] sm:$0xf]
        %v1246 = vld [vmem:[%s6] sm:$0x1]
        %v1248 = vlaneseq
        %v1249 = vshrl.u32 %v1248, 7
        %v1250 = vsub.s32 0, %v1249
        %v1251 = vrot.slane %v1246, %v1250
        %v1269 = vunpack.c.l.b16 %v1230
        %v1270 = vunpack.c.l.b16 %v1231
        %v1271 = vunpack.c.l.b16 %v1232
        %v1272 = vunpack.c.l.b16 %v1233
        %v1273 = vunpack.c.l.b16 %v1234
        %v1274 = vunpack.c.l.b16 %v1235
        %v1275 = vunpack.c.l.b16 %v1236
        %v1276 = vunpack.c.l.b16 %v1237
        %v1277 = vunpack.c.l.b16 %v1238
        %v1278 = vunpack.c.l.b16 %v1239
        %v1279 = vunpack.c.l.b16 %v1240
        %v1280 = vunpack.c.l.b16 %v1241
        %v1281 = vunpack.c.l.b16 %v1242
        %v1282 = vunpack.c.l.b16 %v1243
        %v1283 = vunpack.c.l.b16 %v1244
        %v1284 = vunpack.c.l.b16 %v1245
        %v1285 = vpack.c.b16 %v1270, %v1269
        %v1286 = vpack.c.b16 %v1272, %v1271
        %v1287 = vpack.c.b16 %v1274, %v1273
        %v1288 = vpack.c.b16 %v1276, %v1275
        %v1289 = vpack.c.b16 %v1278, %v1277
        %v1290 = vpack.c.b16 %v1280, %v1279
        %v1291 = vpack.c.b16 %v1282, %v1281
        %v1292 = vpack.c.b16 %v1284, %v1283
        %1301 = vmatprep.subr.bf16.mxu0 0
        %1302 = vmatpush1.bf16.msra.mxu0 %v1285
        %1303 = vmatprep.subr.bf16.mxu0 0
        %1304 = vmatpush1.bf16.msra.mxu0 %v1286
        %1305 = vmatprep.subr.bf16.mxu0 0
        %1306 = vmatpush1.bf16.msra.mxu0 %v1287
        %1307 = vmatprep.subr.bf16.mxu0 0
        %1308 = vmatpush1.bf16.msra.mxu0 %v1288
        %1309 = vmatprep.subr.bf16.mxu0 0
        %1310 = vmatpush1.bf16.msra.mxu0 %v1289
        %1311 = vmatprep.subr.bf16.mxu0 0
        %1312 = vmatpush1.bf16.msra.mxu0 %v1290
        %1313 = vmatprep.subr.bf16.mxu0 0
        %1314 = vmatpush1.bf16.msra.mxu0 %v1291
        %1315 = vmatprep.subr.bf16.mxu0 0
        %1316 = vmatpush1.bf16.msra.mxu0 %v1292
        %1317 = vmatprep.subr.bf16.mxu0 0
        %1318 = vmatpush1.bf16.msra.mxu0 0
        %1319 = vmatprep.subr.bf16.mxu0 0
        %1320 = vmatpush1.bf16.msra.mxu0 0
        %1321 = vmatprep.subr.bf16.mxu0 0
        %1322 = vmatpush1.bf16.msra.mxu0 0
        %1323 = vmatprep.subr.bf16.mxu0 0
        %1324 = vmatpush1.bf16.msra.mxu0 0
        %1325 = vmatprep.subr.bf16.mxu0 0
        %1326 = vmatpush1.bf16.msra.mxu0 0
        %1327 = vmatprep.subr.bf16.mxu0 0
        %1328 = vmatpush1.bf16.msra.mxu0 0
        %1329 = vmatprep.subr.bf16.mxu0 0
        %1330 = vmatpush1.bf16.msra.mxu0 0
        %1331 = vmatprep.subr.bf16.mxu0 0
        %1332 = vmatpush1.bf16.msra.mxu0 0
        %1333 = vmatprep.mubr.bf16.mxu0 0
        %1334 = vmatmul.mubr.bf16.gmra.mrb[0].mxu0 %v1229
        %v1335 = vpop.f32.mrb[0].mxu0
        %v1336 = vadd.f32 %v1251, %v1335
        %v1337 = vpop.f32.mrb[0].mxu0
        %v1338 = vpop.f32.mrb[0].mxu0
        %v1339 = vadd.f32 %v1251, %v1338
        %v1340 = vpop.f32.mrb[0].mxu0
        %1341 = vdwg.mxu0
        %v1342 = vxor.u32 %v1336, 2147483648
        %v1343 = vxor.u32 %v1339, 2147483648
        %v1344 = vmul.f32 %v1342, 1.442695
        %v1345 = vpow.pop %v1344
        %v1346 = vmul.f32 %v1343, 1.442695
        %v1347 = vpow.pop %v1346
        %v1348 = vadd.f32 %v1345, 1.0
        %v1349 = vadd.f32 %v1347, 1.0
        %v1350 = vrcp.pop %v1348
        %v1351 = vmul.f32 1.0, %v1350
        %v1352 = vrcp.pop %v1349
        %v1353 = vmul.f32 1.0, %v1352
        %v1354 = vpack.c.bf16 %v1353, %v1351
        %v1355 = vld [vmem:[#allocation10] sm:$0xf]
        %v1356 = vld [vmem:[#allocation10 + $0x4] sm:$0xf]
        %v1357 = vld [vmem:[#allocation10 + $0x8] sm:$0xf]
        %v1358 = vld [vmem:[#allocation10 + $0xc] sm:$0xf]
        %v1359 = vld [vmem:[#allocation10 + $0x10] sm:$0xf]
        %v1360 = vld [vmem:[#allocation10 + $0x14] sm:$0xf]
        %v1361 = vld [vmem:[#allocation10 + $0x18] sm:$0xf]
        %v1362 = vld [vmem:[#allocation10 + $0x1c] sm:$0xf]
        %v1363 = vld [vmem:[#allocation10 + $0x20] sm:$0xf]
        %v1364 = vld [vmem:[#allocation10 + $0x24] sm:$0xf]
        %v1365 = vld [vmem:[#allocation10 + $0x28] sm:$0xf]
        %v1366 = vld [vmem:[#allocation10 + $0x2c] sm:$0xf]
        %v1367 = vld [vmem:[#allocation10 + $0x30] sm:$0xf]
        %v1368 = vld [vmem:[#allocation10 + $0x34] sm:$0xf]
        %v1369 = vld [vmem:[#allocation10 + $0x38] sm:$0xf]
        %v1370 = vld [vmem:[#allocation10 + $0x3c] sm:$0xf]
        %v1371 = vld [vmem:[%s8] sm:$0x1]
        %v1373 = vlaneseq
        %v1374 = vshrl.u32 %v1373, 7
        %v1375 = vsub.s32 0, %v1374
        %v1376 = vrot.slane %v1371, %v1375
        %v1394 = vunpack.c.l.b16 %v1355
        %v1395 = vunpack.c.l.b16 %v1356
        %v1396 = vunpack.c.l.b16 %v1357
        %v1397 = vunpack.c.l.b16 %v1358
        %v1398 = vunpack.c.l.b16 %v1359
        %v1399 = vunpack.c.l.b16 %v1360
        %v1400 = vunpack.c.l.b16 %v1361
        %v1401 = vunpack.c.l.b16 %v1362
        %v1402 = vunpack.c.l.b16 %v1363
        %v1403 = vunpack.c.l.b16 %v1364
        %v1404 = vunpack.c.l.b16 %v1365
        %v1405 = vunpack.c.l.b16 %v1366
        %v1406 = vunpack.c.l.b16 %v1367
        %v1407 = vunpack.c.l.b16 %v1368
        %v1408 = vunpack.c.l.b16 %v1369
        %v1409 = vunpack.c.l.b16 %v1370
        %v1410 = vpack.c.b16 %v1395, %v1394
        %v1411 = vpack.c.b16 %v1397, %v1396
        %v1412 = vpack.c.b16 %v1399, %v1398
        %v1413 = vpack.c.b16 %v1401, %v1400
        %v1414 = vpack.c.b16 %v1403, %v1402
        %v1415 = vpack.c.b16 %v1405, %v1404
        %v1416 = vpack.c.b16 %v1407, %v1406
        %v1417 = vpack.c.b16 %v1409, %v1408
        %1426 = vmatprep.subr.bf16.mxu0 0
        %1427 = vmatpush1.bf16.msra.mxu0 %v1410
        %1428 = vmatprep.subr.bf16.mxu0 0
        %1429 = vmatpush1.bf16.msra.mxu0 %v1411
        %1430 = vmatprep.subr.bf16.mxu0 0
        %1431 = vmatpush1.bf16.msra.mxu0 %v1412
        %1432 = vmatprep.subr.bf16.mxu0 0
        %1433 = vmatpush1.bf16.msra.mxu0 %v1413
        %1434 = vmatprep.subr.bf16.mxu0 0
        %1435 = vmatpush1.bf16.msra.mxu0 %v1414
        %1436 = vmatprep.subr.bf16.mxu0 0
        %1437 = vmatpush1.bf16.msra.mxu0 %v1415
        %1438 = vmatprep.subr.bf16.mxu0 0
        %1439 = vmatpush1.bf16.msra.mxu0 %v1416
        %1440 = vmatprep.subr.bf16.mxu0 0
        %1441 = vmatpush1.bf16.msra.mxu0 %v1417
        %1442 = vmatprep.subr.bf16.mxu0 0
        %1443 = vmatpush1.bf16.msra.mxu0 0
        %1444 = vmatprep.subr.bf16.mxu0 0
        %1445 = vmatpush1.bf16.msra.mxu0 0
        %1446 = vmatprep.subr.bf16.mxu0 0
        %1447 = vmatpush1.bf16.msra.mxu0 0
        %1448 = vmatprep.subr.bf16.mxu0 0
        %1449 = vmatpush1.bf16.msra.mxu0 0
        %1450 = vmatprep.subr.bf16.mxu0 0
        %1451 = vmatpush1.bf16.msra.mxu0 0
        %1452 = vmatprep.subr.bf16.mxu0 0
        %1453 = vmatpush1.bf16.msra.mxu0 0
        %1454 = vmatprep.subr.bf16.mxu0 0
        %1455 = vmatpush1.bf16.msra.mxu0 0
        %1456 = vmatprep.subr.bf16.mxu0 0
        %1457 = vmatpush1.bf16.msra.mxu0 0
        %1458 = vmatprep.mubr.bf16.mxu0 0
        %1459 = vmatmul.mubr.bf16.gmra.mrb[0].mxu0 %v1354
        %v1460 = vpop.f32.mrb[0].mxu0
        %v1461 = vadd.f32 %v1376, %v1460
        %v1462 = vpop.f32.mrb[0].mxu0
        %v1463 = vpop.f32.mrb[0].mxu0
        %v1464 = vadd.f32 %v1376, %v1463
        %v1465 = vpop.f32.mrb[0].mxu0
        %1466 = vdwg.mxu0
        %v1467 = vxor.u32 %v1461, 2147483648
        %v1468 = vxor.u32 %v1464, 2147483648
        %v1469 = vmul.f32 %v1467, 1.442695
        %v1470 = vpow.pop %v1469
        %v1471 = vmul.f32 %v1468, 1.442695
        %v1472 = vpow.pop %v1471
        %v1473 = vadd.f32 %v1470, 1.0
        %v1474 = vadd.f32 %v1472, 1.0
        %v1475 = vrcp.pop %v1473
        %v1476 = vmul.f32 1.0, %v1475
        %v1477 = vrcp.pop %v1474
        %v1478 = vmul.f32 1.0, %v1477
        %v1479 = vpack.c.bf16 %v1478, %v1476
        %v1480 = vld [vmem:[#allocation11] sm:$0xf]
        %v1481 = vld [vmem:[#allocation11 + $0x4] sm:$0xf]
        %v1482 = vld [vmem:[#allocation11 + $0x8] sm:$0xf]
        %v1483 = vld [vmem:[#allocation11 + $0xc] sm:$0xf]
        %v1484 = vld [vmem:[#allocation11 + $0x10] sm:$0xf]
        %v1485 = vld [vmem:[#allocation11 + $0x14] sm:$0xf]
        %v1486 = vld [vmem:[#allocation11 + $0x18] sm:$0xf]
        %v1487 = vld [vmem:[#allocation11 + $0x1c] sm:$0xf]
        %v1488 = vld [vmem:[#allocation11 + $0x20] sm:$0xf]
        %v1489 = vld [vmem:[#allocation11 + $0x24] sm:$0xf]
        %v1490 = vld [vmem:[#allocation11 + $0x28] sm:$0xf]
        %v1491 = vld [vmem:[#allocation11 + $0x2c] sm:$0xf]
        %v1492 = vld [vmem:[#allocation11 + $0x30] sm:$0xf]
        %v1493 = vld [vmem:[#allocation11 + $0x34] sm:$0xf]
        %v1494 = vld [vmem:[#allocation11 + $0x38] sm:$0xf]
        %v1495 = vld [vmem:[#allocation11 + $0x3c] sm:$0xf]
        %v1496 = vld [vmem:[%s10] sm:$0x1]
        %v1498 = vlaneseq
        %v1499 = vshrl.u32 %v1498, 7
        %v1500 = vsub.s32 0, %v1499
        %v1501 = vrot.slane %v1496, %v1500
        %v1519 = vunpack.c.l.b16 %v1480
        %v1520 = vunpack.c.l.b16 %v1481
        %v1521 = vunpack.c.l.b16 %v1482
        %v1522 = vunpack.c.l.b16 %v1483
        %v1523 = vunpack.c.l.b16 %v1484
        %v1524 = vunpack.c.l.b16 %v1485
        %v1525 = vunpack.c.l.b16 %v1486
        %v1526 = vunpack.c.l.b16 %v1487
        %v1527 = vunpack.c.l.b16 %v1488
        %v1528 = vunpack.c.l.b16 %v1489
        %v1529 = vunpack.c.l.b16 %v1490
        %v1530 = vunpack.c.l.b16 %v1491
        %v1531 = vunpack.c.l.b16 %v1492
        %v1532 = vunpack.c.l.b16 %v1493
        %v1533 = vunpack.c.l.b16 %v1494
        %v1534 = vunpack.c.l.b16 %v1495
        %v1535 = vpack.c.b16 %v1520, %v1519
        %v1536 = vpack.c.b16 %v1522, %v1521
        %v1537 = vpack.c.b16 %v1524, %v1523
        %v1538 = vpack.c.b16 %v1526, %v1525
        %v1539 = vpack.c.b16 %v1528, %v1527
        %v1540 = vpack.c.b16 %v1530, %v1529
        %v1541 = vpack.c.b16 %v1532, %v1531
        %v1542 = vpack.c.b16 %v1534, %v1533
        %1551 = vmatprep.subr.bf16.mxu0 0
        %1552 = vmatpush1.bf16.msra.mxu0 %v1535
        %1553 = vmatprep.subr.bf16.mxu0 0
        %1554 = vmatpush1.bf16.msra.mxu0 %v1536
        %1555 = vmatprep.subr.bf16.mxu0 0
        %1556 = vmatpush1.bf16.msra.mxu0 %v1537
        %1557 = vmatprep.subr.bf16.mxu0 0
        %1558 = vmatpush1.bf16.msra.mxu0 %v1538
        %1559 = vmatprep.subr.bf16.mxu0 0
        %1560 = vmatpush1.bf16.msra.mxu0 %v1539
        %1561 = vmatprep.subr.bf16.mxu0 0
        %1562 = vmatpush1.bf16.msra.mxu0 %v1540
        %1563 = vmatprep.subr.bf16.mxu0 0
        %1564 = vmatpush1.bf16.msra.mxu0 %v1541
        %1565 = vmatprep.subr.bf16.mxu0 0
        %1566 = vmatpush1.bf16.msra.mxu0 %v1542
        %1567 = vmatprep.subr.bf16.mxu0 0
        %1568 = vmatpush1.bf16.msra.mxu0 0
        %1569 = vmatprep.subr.bf16.mxu0 0
        %1570 = vmatpush1.bf16.msra.mxu0 0
        %1571 = vmatprep.subr.bf16.mxu0 0
        %1572 = vmatpush1.bf16.msra.mxu0 0
        %1573 = vmatprep.subr.bf16.mxu0 0
        %1574 = vmatpush1.bf16.msra.mxu0 0
        %1575 = vmatprep.subr.bf16.mxu0 0
        %1576 = vmatpush1.bf16.msra.mxu0 0
        %1577 = vmatprep.subr.bf16.mxu0 0
        %1578 = vmatpush1.bf16.msra.mxu0 0
        %1579 = vmatprep.subr.bf16.mxu0 0
        %1580 = vmatpush1.bf16.msra.mxu0 0
        %1581 = vmatprep.subr.bf16.mxu0 0
        %1582 = vmatpush1.bf16.msra.mxu0 0
        %1583 = vmatprep.mubr.bf16.mxu0 0
        %1584 = vmatmul.mubr.bf16.gmra.mrb[0].mxu0 %v1479
        %v1585 = vpop.f32.mrb[0].mxu0
        %v1586 = vadd.f32 %v1501, %v1585
        %v1587 = vpop.f32.mrb[0].mxu0
        %v1588 = vpop.f32.mrb[0].mxu0
        %v1589 = vadd.f32 %v1501, %v1588
        %v1590 = vpop.f32.mrb[0].mxu0
        %1591 = vdwg.mxu0
        %v1592 = vpack.c.bf16 %v1589, %v1586
        %v1594 = vunpack.c.l.b16 %v1592
        %v1595 = vunpack.c.h.b16 %v1592
        %v1596 = vpack.c.b16 %v1594, %v1594
        %v1597 = vpack.c.b16 %v1595, %v1595
        %1600 = vst [vmem:[%s478] sm:$0xf] %v1596
        %1601 = vst [vmem:[%s478 + $0x4] sm:$0xf] %v1597
        %s1602 = sand.u32 %s275, 1
        %s1603 = scalar_lea.sflag [#allocation4], %s1602
        %s1604 = sand.u32 %s275, 1
        %s1605 = smul.addr %s1604, 8
        %s1606 = scalar_lea.vmem [#allocation13], %s1605
        // Predicated region
        $region89: #{tpu_custom_call.1} parent=63 // pred_check
          %p1607 = pneg %p285
        $region90: #{tpu_custom_call.1} parent=63 // pred_check_branch
          %1609 = sbr.rel (%p1607) target = $region92
        $region91: #{tpu_custom_call.1} parent=63 // pred_region
          %s1610 = smul.u32 2, %s31
          %s1612 = ssub.s32 128, 128
          %1613 = vsyncadd %s1603, %s1612
          %s1614 = smul.addr %s1610, 64
          %s1615 = scalar_lea.hbm %s11, %s1614
          %s1616 = sshll.u32 %s1606, 4
          %s1617 = int_to_ptr.vmem [resolvable:$true] %s1616
          %1622 = dma.vmem_to_hbm [thread:$0]  %s1617, 128, %s1615, %s1603, 64, 64, 4
        $region92: #{tpu_custom_call.1} parent=63 // pred_fallthru
          _
      $region64: #{tpu_custom_call.1} parent=5 // pred_fallthru
        _
      %p1623 = scmp.le.s32.totalorder 2, %s26
      // Predicated region
      $region93: #{tpu_custom_call.1} parent=5 // pred_check
        %p1624 = pneg %p1623
      $region94: #{tpu_custom_call.1} parent=5 // pred_check_branch
        %1626 = sbr.rel (%p1624) target = $region96
      $region95: #{tpu_custom_call.1} parent=5 // pred_region
        %s1627 = ssub.s32 %s26, 2
        // Predicated region
        $region97: #{tpu_custom_call.1} parent=95 // pred_check
          %p1628 = pneg %p291
        $region98: #{tpu_custom_call.1} parent=95 // pred_check_branch
          %1630 = sbr.rel (%p1628) target = $region100
        $region99: #{tpu_custom_call.1} parent=95 // pred_region
          %s1631 = sand.u32 %s276, 1
          %s1632 = scalar_lea.sflag [#allocation4], %s1631
          %s1633 = sand.u32 %s276, 1
          %s1634 = smul.addr %s1633, 8
          %s1635 = scalar_lea.vmem [#allocation13], %s1634
          %1636 = dma.done %s1632, 128
        $region100: #{tpu_custom_call.1} parent=95 // pred_fallthru
          _
      $region96: #{tpu_custom_call.1} parent=5 // pred_fallthru
        _
    $region6: #{tpu_custom_call.1} parent=1 // loop_footer
      %s30 = sadd.s32 1, %s26
    $region7: #{tpu_custom_call.1} parent=1 // loop_footer_branch
      %25 = sbr.rel target = $region3
    $region8: #{tpu_custom_call.1} parent=1 // loop_exit
      _
    %1637 = vsyncpa [#allocation3], 1
    %s1638 = scalar_lea.sflag [#allocation3], 1
    %1639 = vsyncpa %s1638, 1
    %1640 = vsyncpa [#allocation6], 1
    %1641 = vsyncpa [#allocation9], 1
    %1642 = vsyncpa [#allocation12], 1
    %1643 = vsyncpa [#allocation4], 1
    %s1644 = scalar_lea.sflag [#allocation4], 1
    %1645 = vsyncpa %s1644, 1

</llo_original>
